<compile_context>
chip_gen: v6e
topology: v6e:2x2x1
jax: 0.10.0
libtpu: 0.0.40
codegen_flags: <defaults>
</compile_context>

<pallas_src>
import functools
import math

import jax
import jax.numpy as jnp
from jax.experimental import pallas as pl
from jax.experimental.pallas import tpu as pltpu


def _node_edge_block_kernel(
    x_ref, e_ref, m_ref,
    wqkv_ref, bqkv_ref, wema_ref, bema_ref,
    weo_ref, beo_ref, wef_ref, bef_ref, wxo_ref, bxo_ref,
    newx_ref, newe_ref,
    *, b_tile, n, dx, de, n_head):
  """Fused NodeEdgeBlock forward for one tile of `b_tile` graphs."""
  f32 = jnp.float32
  bf16 = jnp.bfloat16
  bn = b_tile * n           # destination rows in this tile
  bnn = b_tile * n * n      # (destination, source) pairs in this tile

  x = x_ref[...]            # [bn, dx]   bf16
  ef = e_ref[...]           # [bnn, de]  bf16, destination-major (row = b*n*n + i*n + j)
  mcol = m_ref[...]         # [bn, 1]    f32 node mask

  def expand_over_dst(a, d):
    # [bn, d] indexed by source node j  ->  [bn, n, d] where row r = b*n + i
    # (destination) and axis 1 walks that graph's source nodes j.
    a3 = a.reshape(b_tile, n, d)
    return jnp.broadcast_to(a3[:, None, :, :], (b_tile, n, n, d)).reshape(bn, n, d)

  # ---- masks, hoisted: built once per tile from the node-mask column ------
  m_src = expand_over_dst(mcol, 1)                       # [bn, n, 1] mask of source j
  pair3 = mcol[:, :, None] * m_src                       # [bn, n, 1] mask_i * mask_j
  src_add = jnp.where(m_src != 0.0, f32(0.0), f32(-1e30))  # additive softmax mask

  # ---- fused Q|K|V projection: one [bn,dx] @ [dx,3dx] matmul --------------
  qkv = (jnp.dot(x, wqkv_ref[...], preferred_element_type=f32)
         + bqkv_ref[...]) * mcol                         # [bn, 3dx] f32
  q = qkv[:, 0:dx]
  k = qkv[:, dx:2 * dx]
  v = qkv[:, 2 * dx:3 * dx]

  # ---- fused e_mul|e_add projection: one [bnn,de] @ [de,2dx] matmul -------
  e12 = (jnp.dot(ef, wema_ref[...], preferred_element_type=f32)
         + bema_ref[...])                                # [bnn, 2dx] f32
  e12 = e12.reshape(bn, n, 2 * dx) * pair3               # * e_mask1 * e_mask2
  e1 = e12[:, :, 0:dx]
  e2 = e12[:, :, dx:2 * dx]

  # ---- Y[b,i,j,:] = Q[b,i]*K[b,j]/sqrt(df)*(E1+1) + E2  (one [bn,n,dx] slab)
  inv_sqrt_df = f32(1.0 / math.sqrt(dx // n_head))
  k_exp = expand_over_dst(k, dx)                         # [bn, n, dx]
  y3 = (q[:, None, :] * k_exp) * inv_sqrt_df
  y3 = y3 * (e1 + 1.0) + e2                              # [bn, n, dx] f32

  # ---- newE path: e_out -> pair mask -> e_final (two large matmuls) -------
  ne = (jnp.dot(y3.reshape(bnn, dx).astype(bf16), weo_ref[...],
                preferred_element_type=f32) + beo_ref[...])       # [bnn, de]
  ne3 = ne.reshape(bn, n, de) * pair3                    # [bn, n, de]
  # Flatten over (source j, de): contiguous lane concatenation -> [bn, n*de],
  # feeding one K = n*de matmul against the unreshaped e_final weight.
  ne_wide = jnp.concatenate([ne3[:, j, :] for j in range(n)], axis=1)
  newe = jnp.dot(ne_wide.astype(bf16), wef_ref[...],
                 preferred_element_type=f32) + bef_ref[...]       # [bn, de]
  newe_ref[...] = newe

  # ---- masked per-feature softmax over source axis j + weighted V ---------
  ym = y3 + src_add                                      # masked -> exp underflows to 0
  mmax = jnp.max(ym, axis=1, keepdims=True)              # [bn, 1, dx]
  ex = jnp.exp(ym - mmax)                                # [bn, n, dx]
  denom = jnp.sum(ex, axis=1)                            # [bn, dx]  (>= 1, never 0)
  v_exp = expand_over_dst(v, dx)                         # [bn, n, dx]
  wv = jnp.sum(ex * v_exp, axis=1)                       # [bn, dx]
  # Exact reciprocal (review note: keep the softmax normalization exact).
  weighted_v = wv * pl.reciprocal(denom, approx=False)

  newx = jnp.dot(weighted_v.astype(bf16), wxo_ref[...],
                 preferred_element_type=f32) + bxo_ref[...]
  newx_ref[...] = newx * mcol


def _choose_b_tile(bs, n, dx, de, vmem_budget_bytes=8 * 1024 * 1024):
  """Graphs per grid step: enough rows to fill the MXU on the E-path matmuls
  (M = b_tile*n*n >= ~256) while keeping the per-step VMEM working set small
  (v7x has 64 MiB) and leaving >= 2 grid steps (two v7x TCs, pipelining)."""
  # Rough per-graph working set: bf16 E/X blocks (x2 double-buffered) plus
  # the f32 Y / E1|E2 / exp / e_out slabs.
  per_graph = (n * n * (2 * 2 * de + 8 * 4 * dx)
               + n * (2 * 2 * dx + 8 * 4 * dx + 2 * 4 * de))
  cap = max(1, vmem_budget_bytes // max(1, per_graph))
  target = max(1, -(-256 // (n * n)))            # ceil(256 / n^2) graphs
  bt = min(cap, target)
  bt = min(bt, max(1, -(-bs // 2)))              # keep grid >= 2 when bs >= 2
  # (b_tile * n) rows must be sublane (8) aligned for clean block DMAs.
  step = 8 // math.gcd(n, 8)
  bt = max(step, (bt // step) * step)
  return bt


def node_edge_block_forward(params, X, E, node_mask, n_head, b_tile=None):
  """NodeEdgeBlock.forward: returns (newX [bs,n,dx], newE [bs,n,de])."""
  bs, n, dx = X.shape
  de = E.shape[-1]
  assert dx % n_head == 0
  f32, bf16 = jnp.float32, jnp.bfloat16

  bt = b_tile if b_tile is not None else _choose_b_tile(bs, n, dx, de)
  n_tiles = -(-bs // bt)
  bs_pad = n_tiles * bt
  if bs_pad != bs:  # pad batch with fully-masked graphs; sliced off below
    pad = bs_pad - bs
    X = jnp.concatenate([X, jnp.zeros((pad, n, dx), X.dtype)], axis=0)
    E = jnp.concatenate([E, jnp.zeros((pad, n, n, de), E.dtype)], axis=0)
    node_mask = jnp.concatenate(
        [node_mask, jnp.zeros((pad, n), node_mask.dtype)], axis=0)

  # Flat 2D slabs (E destination-major: row = b*n*n + i*n + j, NO swapaxes).
  # bf16 MXU operands, f32 mask column.
  xf = X.reshape(bs_pad * n, dx).astype(bf16)
  ef = E.reshape(bs_pad * n * n, de).astype(bf16)
  mcol = node_mask.reshape(bs_pad * n, 1).astype(f32)

  # Packed weights: q|k|v and e_mul|e_add fused; MXU operands bf16, biases f32.
  wqkv = jnp.concatenate([params["w_q"], params["w_k"], params["w_v"]],
                         axis=1).astype(bf16)
  bqkv = jnp.concatenate([params["b_q"], params["b_k"], params["b_v"]],
                         axis=1).astype(f32)
  wema = jnp.concatenate([params["w_e_mul"], params["w_e_add"]],
                         axis=1).astype(bf16)
  bema = jnp.concatenate([params["b_e_mul"], params["b_e_add"]],
                         axis=1).astype(f32)
  weo = params["w_e_out"].astype(bf16)
  beo = params["b_e_out"].astype(f32)
  wef = params["w_e_final"].astype(bf16)    # [n*de, de]  (no host reshape needed)
  bef = params["b_e_final"].astype(f32)
  wxo = params["w_x_out"].astype(bf16)
  bxo = params["b_x_out"].astype(f32)

  kernel = functools.partial(_node_edge_block_kernel,
                             b_tile=bt, n=n, dx=dx, de=de, n_head=n_head)

  def tiled(rows_per_graph, cols):
    return pl.BlockSpec((bt * rows_per_graph, cols), lambda g: (g, 0))

  def shared(shape):
    # Constant-index weight blocks, resident across all grid steps.
    # TODO(synk): on v7x, pipeline_mode=pl.Buffered(1) here would halve the
    # weight VMEM footprint at large dx/de (left default for portability).
    return pl.BlockSpec(shape, lambda g: (0, 0))

  in_specs = [
      tiled(n, dx),            # X slab
      tiled(n * n, de),        # E slab (destination-major)
      tiled(n, 1),             # node-mask column
      shared((dx, 3 * dx)), shared((1, 3 * dx)),     # q|k|v
      shared((de, 2 * dx)), shared((1, 2 * dx)),     # e_mul|e_add
      shared((dx, de)), shared((1, de)),             # e_out
      shared((n * de, de)), shared((1, de)),         # e_final
      shared((dx, dx)), shared((1, dx)),             # x_out
  ]
  out_specs = [tiled(n, dx), tiled(n, de)]

  newx_f, newe_f = pl.pallas_call(
      kernel,
      out_shape=(jax.ShapeDtypeStruct((bs_pad * n, dx), f32),
                 jax.ShapeDtypeStruct((bs_pad * n, de), f32)),
      grid_spec=pltpu.PrefetchScalarGridSpec(
          num_scalar_prefetch=0,
          grid=(n_tiles,),
          in_specs=in_specs,
          out_specs=out_specs),
      compiler_params=pltpu.CompilerParams(
          dimension_semantics=("parallel",),
          vmem_limit_bytes=48 * 1024 * 1024),   # explicit budget (fits v7x 64 MiB)
  )(xf, ef, mcol, wqkv, bqkv, wema, bema, weo, beo, wef, bef, wxo, bxo)

  newx = newx_f.reshape(bs_pad, n, dx)[:bs]
  newe = newe_f.reshape(bs_pad, n, de)[:bs]
  return newx, newe


def init_params(key, n, dx, de):
  """Deterministic Linear params, stored as [in, out] (= torch weight.T)."""
  def linear(k, fan_in, fan_out):
    kw, kb = jax.random.split(k)
    lim = 1.0 / math.sqrt(fan_in)
    w = jax.random.uniform(kw, (fan_in, fan_out), jnp.float32, -lim, lim)
    b = jax.random.uniform(kb, (1, fan_out), jnp.float32, -lim, lim)
    return w, b

  ks = jax.random.split(key, 8)
  p = {}
  p["w_q"], p["b_q"] = linear(ks[0], dx, dx)
  p["w_k"], p["b_k"] = linear(ks[1], dx, dx)
  p["w_v"], p["b_v"] = linear(ks[2], dx, dx)
  p["w_e_mul"], p["b_e_mul"] = linear(ks[3], de, dx)
  p["w_e_add"], p["b_e_add"] = linear(ks[4], de, dx)
  p["w_e_out"], p["b_e_out"] = linear(ks[5], dx, de)
  p["w_e_final"], p["b_e_final"] = linear(ks[6], n * de, de)  # LazyLinear(de)
  p["w_x_out"], p["b_x_out"] = linear(ks[7], dx, dx)
  return p


def reference_forward(params, X, E, node_mask, n_head):
  """Straight jnp transcription of NodeEdgeBlock.forward (f32, for checking)."""
  bs, n, dx = X.shape
  de = E.shape[-1]
  df = dx // n_head
  xm = node_mask[:, :, None]                   # [bs, n, 1]
  em1 = xm[:, :, None, :]                      # [bs, n, 1, 1]
  em2 = xm[:, None, :, :]                      # [bs, 1, n, 1]
  Q = (X @ params["w_q"] + params["b_q"]) * xm
  K = (X @ params["w_k"] + params["b_k"]) * xm
  V = (X @ params["w_v"] + params["b_v"]) * xm
  Qh = Q.reshape(bs, n, n_head, df)[:, :, None]    # [bs, n, 1, h, df]
  Kh = K.reshape(bs, n, n_head, df)[:, None]       # [bs, 1, n, h, df]
  Y = Qh * Kh / math.sqrt(df)
  E1 = ((E @ params["w_e_mul"] + params["b_e_mul"]) * em1 * em2
        ).reshape(bs, n, n, n_head, df)
  E2 = ((E @ params["w_e_add"] + params["b_e_add"]) * em1 * em2
        ).reshape(bs, n, n, n_head, df)
  Y = Y * (E1 + 1.0) + E2
  newE = Y.reshape(bs, n, n, dx)
  newE = (newE @ params["w_e_out"] + params["b_e_out"]) * em1 * em2
  newE = newE.reshape(bs, n, n * de)
  newE = newE @ params["w_e_final"] + params["b_e_final"]
  valid = (node_mask[:, None, :, None, None] != 0.0)   # [bs, 1, n, 1, 1]
  attn = jax.nn.softmax(jnp.where(valid, Y, -jnp.inf), axis=2)
  Vh = V.reshape(bs, n, n_head, df)[:, None]       # [bs, 1, n, h, df]
  weighted_V = (attn * Vh).sum(axis=2).reshape(bs, n, dx)
  newX = (weighted_V @ params["w_x_out"] + params["b_x_out"]) * xm
  return newX, newE


if __name__ == "__main__":
  BS, N, DX, DE, N_HEAD = 4, 8, 64, 32, 4   # dx % n_head == 0, df = 16

  key = jax.random.PRNGKey(0)
  kx, ke, kp = jax.random.split(key, 3)
  X = jax.random.normal(kx, (BS, N, DX), jnp.float32)
  E = jax.random.normal(ke, (BS, N, N, DE), jnp.float32)
  node_mask = jnp.array([[1, 1, 1, 1, 1, 1, 0, 0],
                         [1, 1, 1, 1, 1, 0, 0, 0],
                         [1, 1, 1, 1, 1, 1, 1, 1],
                         [1, 1, 1, 0, 0, 0, 0, 0]], jnp.float32)
  params = init_params(kp, N, DX, DE)

  fwd = jax.jit(functools.partial(node_edge_block_forward, n_head=N_HEAD))
  newX, newE = fwd(params, X, E, node_mask)
  newX, newE = jax.block_until_ready((newX, newE))

  assert newX.shape == (BS, N, DX) and newE.shape == (BS, N, DE)
  assert bool(jnp.all(jnp.isfinite(newX))) and bool(jnp.all(jnp.isfinite(newE)))

  refX, refE = reference_forward(params, X, E, node_mask, N_HEAD)
  # bf16 MXU operands (f32 accumulation) vs. the all-f32 reference -> the
  # tolerance is loosened slightly; structural errors would be O(0.1-1).
  assert bool(jnp.allclose(newX, refX, rtol=3e-2, atol=1e-2)), \
      float(jnp.max(jnp.abs(newX - refX)))
  assert bool(jnp.allclose(newE, refE, rtol=3e-2, atol=1e-2)), \
      float(jnp.max(jnp.abs(newE - refE)))
  print("KERNEL_OK")
</pallas_src>

<mosaic_0001>
module attributes {stable_mosaic.version = 11 : i64} {
  func.func @_node_edge_block_kernel(%arg0: i32, %arg1: memref<16x64xbf16, #tpu.memory_space<vmem>>, %arg2: memref<128x32xbf16, #tpu.memory_space<vmem>>, %arg3: memref<16x1xf32, #tpu.memory_space<vmem>>, %arg4: memref<64x192xbf16, #tpu.memory_space<vmem>>, %arg5: memref<1x192xf32, #tpu.memory_space<vmem>>, %arg6: memref<32x128xbf16, #tpu.memory_space<vmem>>, %arg7: memref<1x128xf32, #tpu.memory_space<vmem>>, %arg8: memref<64x32xbf16, #tpu.memory_space<vmem>>, %arg9: memref<1x32xf32, #tpu.memory_space<vmem>>, %arg10: memref<256x32xbf16, #tpu.memory_space<vmem>>, %arg11: memref<1x32xf32, #tpu.memory_space<vmem>>, %arg12: memref<64x64xbf16, #tpu.memory_space<vmem>>, %arg13: memref<1x64xf32, #tpu.memory_space<vmem>>, %arg14: memref<16x64xf32, #tpu.memory_space<vmem>>, %arg15: memref<16x32xf32, #tpu.memory_space<vmem>>) attributes {dimension_semantics = [#tpu.dimension_semantics<parallel>], iteration_bounds = array<i64: 2>, scalar_prefetch = 0 : i64, scratch_operands = 0 : i64, tpu.core_type = #tpu.core_type<tc>, window_params = [{transform_indices = @transform_0, window_bounds = array<i64: 16, 64>}, {transform_indices = @transform_1, window_bounds = array<i64: 128, 32>}, {transform_indices = @transform_2, window_bounds = array<i64: 16, 1>}, {pipeline_mode = #tpu.pipeline_mode<synchronous>, transform_indices = @transform_3, window_bounds = array<i64: 64, 192>}, {pipeline_mode = #tpu.pipeline_mode<synchronous>, transform_indices = @transform_4, window_bounds = array<i64: 1, 192>}, {pipeline_mode = #tpu.pipeline_mode<synchronous>, transform_indices = @transform_5, window_bounds = array<i64: 32, 128>}, {pipeline_mode = #tpu.pipeline_mode<synchronous>, transform_indices = @transform_6, window_bounds = array<i64: 1, 128>}, {pipeline_mode = #tpu.pipeline_mode<synchronous>, transform_indices = @transform_7, window_bounds = array<i64: 64, 32>}, {pipeline_mode = #tpu.pipeline_mode<synchronous>, transform_indices = @transform_8, window_bounds = array<i64: 1, 32>}, {pipeline_mode = #tpu.pipeline_mode<synchronous>, transform_indices = @transform_9, window_bounds = array<i64: 256, 32>}, {pipeline_mode = #tpu.pipeline_mode<synchronous>, transform_indices = @transform_10, window_bounds = array<i64: 1, 32>}, {pipeline_mode = #tpu.pipeline_mode<synchronous>, transform_indices = @transform_11, window_bounds = array<i64: 64, 64>}, {pipeline_mode = #tpu.pipeline_mode<synchronous>, transform_indices = @transform_12, window_bounds = array<i64: 1, 64>}, {transform_indices = @transform_13, window_bounds = array<i64: 16, 64>}, {transform_indices = @transform_14, window_bounds = array<i64: 16, 32>}]} {
    %c0 = arith.constant 0 : index
    %c0_0 = arith.constant 0 : index
    %0 = vector.load %arg1[%c0, %c0_0] : memref<16x64xbf16, #tpu.memory_space<vmem>>, vector<16x64xbf16>
    %c0_1 = arith.constant 0 : index
    %c0_2 = arith.constant 0 : index
    %1 = vector.load %arg2[%c0_1, %c0_2] : memref<128x32xbf16, #tpu.memory_space<vmem>>, vector<128x32xbf16>
    %c0_3 = arith.constant 0 : index
    %c0_4 = arith.constant 0 : index
    %2 = vector.load %arg3[%c0_3, %c0_4] : memref<16x1xf32, #tpu.memory_space<vmem>>, vector<16x1xf32>
    %3 = vector.shape_cast %2 : vector<16x1xf32> to vector<2x8x1xf32>
    %4 = vector.shape_cast %3 : vector<2x8x1xf32> to vector<2x1x8x1xf32>
    %5 = vector.shape_cast %4 : vector<2x1x8x1xf32> to vector<2x1x8x1xf32>
    %6 = vector.broadcast %5 : vector<2x1x8x1xf32> to vector<2x8x8x1xf32>
    %7 = vector.shape_cast %6 : vector<2x8x8x1xf32> to vector<16x8x1xf32>
    %8 = vector.shape_cast %2 : vector<16x1xf32> to vector<16x1x1xf32>
    %9 = vector.broadcast %8 : vector<16x1x1xf32> to vector<16x8x1xf32>
    %10 = arith.mulf %9, %7 : vector<16x8x1xf32>
    %cst = arith.constant 0.000000e+00 : f32
    %11 = vector.broadcast %cst : f32 to vector<16x8x1xf32>
    %12 = arith.cmpf one, %7, %11 : vector<16x8x1xf32>
    %cst_5 = arith.constant 0.000000e+00 : f32
    %cst_6 = arith.constant -1.000000e+30 : f32
    %13 = vector.broadcast %cst_5 : f32 to vector<16x8x1xf32>
    %14 = vector.broadcast %cst_6 : f32 to vector<16x8x1xf32>
    %15 = arith.select %12, %13, %14 : vector<16x8x1xi1>, vector<16x8x1xf32>
    %c0_7 = arith.constant 0 : index
    %c0_8 = arith.constant 0 : index
    %16 = vector.load %arg4[%c0_7, %c0_8] : memref<64x192xbf16, #tpu.memory_space<vmem>>, vector<64x192xbf16>
    %cst_9 = arith.constant dense<0.000000e+00> : vector<16x192xf32>
    %17 = tpu.matmul %0, %16, %cst_9 {dimension_numbers = #tpu.dot_dimension_numbers<[1], [0], [0], [1], [0, 0, 1, 1], [], []>} : vector<16x64xbf16>, vector<64x192xbf16>, vector<16x192xf32> -> vector<16x192xf32>
    %c0_10 = arith.constant 0 : index
    %c0_11 = arith.constant 0 : index
    %18 = vector.load %arg5[%c0_10, %c0_11] : memref<1x192xf32, #tpu.memory_space<vmem>>, vector<1x192xf32>
    %19 = vector.broadcast %18 : vector<1x192xf32> to vector<16x192xf32>
    %20 = arith.addf %17, %19 : vector<16x192xf32>
    %21 = vector.broadcast %2 : vector<16x1xf32> to vector<16x192xf32>
    %22 = arith.mulf %20, %21 : vector<16x192xf32>
    %23 = vector.extract_strided_slice %22 {offsets = [0, 0], sizes = [16, 64], strides = [1, 1]} : vector<16x192xf32> to vector<16x64xf32>
    %24 = vector.extract_strided_slice %22 {offsets = [0, 64], sizes = [16, 64], strides = [1, 1]} : vector<16x192xf32> to vector<16x64xf32>
    %25 = vector.extract_strided_slice %22 {offsets = [0, 128], sizes = [16, 64], strides = [1, 1]} : vector<16x192xf32> to vector<16x64xf32>
    %c0_12 = arith.constant 0 : index
    %c0_13 = arith.constant 0 : index
    %26 = vector.load %arg6[%c0_12, %c0_13] : memref<32x128xbf16, #tpu.memory_space<vmem>>, vector<32x128xbf16>
    %cst_14 = arith.constant dense<0.000000e+00> : vector<128x128xf32>
    %27 = tpu.matmul %1, %26, %cst_14 {dimension_numbers = #tpu.dot_dimension_numbers<[1], [0], [0], [1], [0, 0, 1, 1], [], []>} : vector<128x32xbf16>, vector<32x128xbf16>, vector<128x128xf32> -> vector<128x128xf32>
    %c0_15 = arith.constant 0 : index
    %c0_16 = arith.constant 0 : index
    %28 = vector.load %arg7[%c0_15, %c0_16] : memref<1x128xf32, #tpu.memory_space<vmem>>, vector<1x128xf32>
    %29 = vector.broadcast %28 : vector<1x128xf32> to vector<128x128xf32>
    %30 = arith.addf %27, %29 : vector<128x128xf32>
    %31 = vector.shape_cast %30 : vector<128x128xf32> to vector<16x8x128xf32>
    %32 = vector.broadcast %10 : vector<16x8x1xf32> to vector<16x8x128xf32>
    %33 = arith.mulf %31, %32 : vector<16x8x128xf32>
    %34 = vector.extract_strided_slice %33 {offsets = [0, 0, 0], sizes = [16, 8, 64], strides = [1, 1, 1]} : vector<16x8x128xf32> to vector<16x8x64xf32>
    %35 = vector.extract_strided_slice %33 {offsets = [0, 0, 64], sizes = [16, 8, 64], strides = [1, 1, 1]} : vector<16x8x128xf32> to vector<16x8x64xf32>
    %36 = vector.shape_cast %24 : vector<16x64xf32> to vector<2x8x64xf32>
    %37 = vector.shape_cast %36 : vector<2x8x64xf32> to vector<2x1x8x64xf32>
    %38 = vector.shape_cast %37 : vector<2x1x8x64xf32> to vector<2x1x8x64xf32>
    %39 = vector.broadcast %38 : vector<2x1x8x64xf32> to vector<2x8x8x64xf32>
    %40 = vector.shape_cast %39 : vector<2x8x8x64xf32> to vector<16x8x64xf32>
    %41 = vector.shape_cast %23 : vector<16x64xf32> to vector<16x1x64xf32>
    %42 = vector.broadcast %41 : vector<16x1x64xf32> to vector<16x8x64xf32>
    %43 = arith.mulf %42, %40 : vector<16x8x64xf32>
    %cst_17 = arith.constant 2.500000e-01 : f32
    %44 = vector.broadcast %cst_17 : f32 to vector<16x8x64xf32>
    %45 = arith.mulf %43, %44 : vector<16x8x64xf32>
    %cst_18 = arith.constant 1.000000e+00 : f32
    %46 = vector.broadcast %cst_18 : f32 to vector<16x8x64xf32>
    %47 = arith.addf %34, %46 : vector<16x8x64xf32>
    %48 = arith.mulf %45, %47 : vector<16x8x64xf32>
    %49 = arith.addf %48, %35 : vector<16x8x64xf32>
    %50 = vector.shape_cast %49 : vector<16x8x64xf32> to vector<128x64xf32>
    %51 = arith.truncf %50 : vector<128x64xf32> to vector<128x64xbf16>
    %c0_19 = arith.constant 0 : index
    %c0_20 = arith.constant 0 : index
    %52 = vector.load %arg8[%c0_19, %c0_20] : memref<64x32xbf16, #tpu.memory_space<vmem>>, vector<64x32xbf16>
    %cst_21 = arith.constant dense<0.000000e+00> : vector<128x32xf32>
    %53 = tpu.matmul %51, %52, %cst_21 {dimension_numbers = #tpu.dot_dimension_numbers<[1], [0], [0], [1], [0, 0, 1, 1], [], []>} : vector<128x64xbf16>, vector<64x32xbf16>, vector<128x32xf32> -> vector<128x32xf32>
    %c0_22 = arith.constant 0 : index
    %c0_23 = arith.constant 0 : index
    %54 = vector.load %arg9[%c0_22, %c0_23] : memref<1x32xf32, #tpu.memory_space<vmem>>, vector<1x32xf32>
    %55 = vector.broadcast %54 : vector<1x32xf32> to vector<128x32xf32>
    %56 = arith.addf %53, %55 : vector<128x32xf32>
    %57 = vector.shape_cast %56 : vector<128x32xf32> to vector<16x8x32xf32>
    %58 = vector.broadcast %10 : vector<16x8x1xf32> to vector<16x8x32xf32>
    %59 = arith.mulf %57, %58 : vector<16x8x32xf32>
    %60 = vector.extract_strided_slice %59 {offsets = [0, 0, 0], sizes = [16, 1, 32], strides = [1, 1, 1]} : vector<16x8x32xf32> to vector<16x1x32xf32>
    %61 = vector.shape_cast %60 : vector<16x1x32xf32> to vector<16x32xf32>
    %62 = vector.extract_strided_slice %59 {offsets = [0, 1, 0], sizes = [16, 1, 32], strides = [1, 1, 1]} : vector<16x8x32xf32> to vector<16x1x32xf32>
    %63 = vector.shape_cast %62 : vector<16x1x32xf32> to vector<16x32xf32>
    %64 = vector.extract_strided_slice %59 {offsets = [0, 2, 0], sizes = [16, 1, 32], strides = [1, 1, 1]} : vector<16x8x32xf32> to vector<16x1x32xf32>
    %65 = vector.shape_cast %64 : vector<16x1x32xf32> to vector<16x32xf32>
    %66 = vector.extract_strided_slice %59 {offsets = [0, 3, 0], sizes = [16, 1, 32], strides = [1, 1, 1]} : vector<16x8x32xf32> to vector<16x1x32xf32>
    %67 = vector.shape_cast %66 : vector<16x1x32xf32> to vector<16x32xf32>
    %68 = vector.extract_strided_slice %59 {offsets = [0, 4, 0], sizes = [16, 1, 32], strides = [1, 1, 1]} : vector<16x8x32xf32> to vector<16x1x32xf32>
    %69 = vector.shape_cast %68 : vector<16x1x32xf32> to vector<16x32xf32>
    %70 = vector.extract_strided_slice %59 {offsets = [0, 5, 0], sizes = [16, 1, 32], strides = [1, 1, 1]} : vector<16x8x32xf32> to vector<16x1x32xf32>
    %71 = vector.shape_cast %70 : vector<16x1x32xf32> to vector<16x32xf32>
    %72 = vector.extract_strided_slice %59 {offsets = [0, 6, 0], sizes = [16, 1, 32], strides = [1, 1, 1]} : vector<16x8x32xf32> to vector<16x1x32xf32>
    %73 = vector.shape_cast %72 : vector<16x1x32xf32> to vector<16x32xf32>
    %74 = vector.extract_strided_slice %59 {offsets = [0, 7, 0], sizes = [16, 1, 32], strides = [1, 1, 1]} : vector<16x8x32xf32> to vector<16x1x32xf32>
    %75 = vector.shape_cast %74 : vector<16x1x32xf32> to vector<16x32xf32>
    %76 = tpu.concatenate %61, %63, %65, %67, %69, %71, %73, %75 in 1 : vector<16x32xf32>, vector<16x32xf32>, vector<16x32xf32>, vector<16x32xf32>, vector<16x32xf32>, vector<16x32xf32>, vector<16x32xf32>, vector<16x32xf32> -> vector<16x256xf32>
    %77 = arith.truncf %76 : vector<16x256xf32> to vector<16x256xbf16>
    %c0_24 = arith.constant 0 : index
    %c0_25 = arith.constant 0 : index
    %78 = vector.load %arg10[%c0_24, %c0_25] : memref<256x32xbf16, #tpu.memory_space<vmem>>, vector<256x32xbf16>
    %cst_26 = arith.constant dense<0.000000e+00> : vector<16x32xf32>
    %79 = tpu.matmul %77, %78, %cst_26 {dimension_numbers = #tpu.dot_dimension_numbers<[1], [0], [0], [1], [0, 0, 1, 1], [], []>} : vector<16x256xbf16>, vector<256x32xbf16>, vector<16x32xf32> -> vector<16x32xf32>
    %c0_27 = arith.constant 0 : index
    %c0_28 = arith.constant 0 : index
    %80 = vector.load %arg11[%c0_27, %c0_28] : memref<1x32xf32, #tpu.memory_space<vmem>>, vector<1x32xf32>
    %81 = vector.broadcast %80 : vector<1x32xf32> to vector<16x32xf32>
    %82 = arith.addf %79, %81 : vector<16x32xf32>
    %c0_29 = arith.constant 0 : index
    %c0_30 = arith.constant 0 : index
    %83 = vector.load %arg15[%c0_29, %c0_30] : memref<16x32xf32, #tpu.memory_space<vmem>>, vector<16x32xf32>
    tpu.vector_store %arg15[%c0_29, %c0_30], %82 {strides = array<i32>} : memref<16x32xf32, #tpu.memory_space<vmem>>, vector<16x32xf32>,
    %84 = vector.broadcast %15 : vector<16x8x1xf32> to vector<16x8x64xf32>
    %85 = arith.addf %49, %84 : vector<16x8x64xf32>
    %cst_31 = arith.constant dense<0xFF800000> : vector<16x64xf32>
    %86 = vector.multi_reduction <maximumf>, %85, %cst_31 [1] : vector<16x8x64xf32> to vector<16x64xf32>
    %87 = vector.shape_cast %86 : vector<16x64xf32> to vector<16x1x64xf32>
    %88 = vector.broadcast %87 : vector<16x1x64xf32> to vector<16x8x64xf32>
    %89 = arith.subf %85, %88 : vector<16x8x64xf32>
    %90 = math.exp %89 : vector<16x8x64xf32>
    %cst_32 = arith.constant dense<0.000000e+00> : vector<16x64xf32>
    %91 = vector.multi_reduction <add>, %90, %cst_32 [1] : vector<16x8x64xf32> to vector<16x64xf32>
    %92 = vector.shape_cast %25 : vector<16x64xf32> to vector<2x8x64xf32>
    %93 = vector.shape_cast %92 : vector<2x8x64xf32> to vector<2x1x8x64xf32>
    %94 = vector.shape_cast %93 : vector<2x1x8x64xf32> to vector<2x1x8x64xf32>
    %95 = vector.broadcast %94 : vector<2x1x8x64xf32> to vector<2x8x8x64xf32>
    %96 = vector.shape_cast %95 : vector<2x8x8x64xf32> to vector<16x8x64xf32>
    %97 = arith.mulf %90, %96 : vector<16x8x64xf32>
    %cst_33 = arith.constant dense<0.000000e+00> : vector<16x64xf32>
    %98 = vector.multi_reduction <add>, %97, %cst_33 [1] : vector<16x8x64xf32> to vector<16x64xf32>
    %99 = tpu.reciprocal %91 : vector<16x64xf32> -> vector<16x64xf32>
    %100 = arith.mulf %98, %99 : vector<16x64xf32>
    %101 = arith.truncf %100 : vector<16x64xf32> to vector<16x64xbf16>
    %c0_34 = arith.constant 0 : index
    %c0_35 = arith.constant 0 : index
    %102 = vector.load %arg12[%c0_34, %c0_35] : memref<64x64xbf16, #tpu.memory_space<vmem>>, vector<64x64xbf16>
    %cst_36 = arith.constant dense<0.000000e+00> : vector<16x64xf32>
    %103 = tpu.matmul %101, %102, %cst_36 {dimension_numbers = #tpu.dot_dimension_numbers<[1], [0], [0], [1], [0, 0, 1, 1], [], []>} : vector<16x64xbf16>, vector<64x64xbf16>, vector<16x64xf32> -> vector<16x64xf32>
    %c0_37 = arith.constant 0 : index
    %c0_38 = arith.constant 0 : index
    %104 = vector.load %arg13[%c0_37, %c0_38] : memref<1x64xf32, #tpu.memory_space<vmem>>, vector<1x64xf32>
    %105 = vector.broadcast %104 : vector<1x64xf32> to vector<16x64xf32>
    %106 = arith.addf %103, %105 : vector<16x64xf32>
    %107 = vector.broadcast %2 : vector<16x1xf32> to vector<16x64xf32>
    %108 = arith.mulf %106, %107 : vector<16x64xf32>
    %c0_39 = arith.constant 0 : index
    %c0_40 = arith.constant 0 : index
    %109 = vector.load %arg14[%c0_39, %c0_40] : memref<16x64xf32, #tpu.memory_space<vmem>>, vector<16x64xf32>
    tpu.vector_store %arg14[%c0_39, %c0_40], %108 {strides = array<i32>} : memref<16x64xf32, #tpu.memory_space<vmem>>, vector<16x64xf32>,
    return
  }
  func.func @transform_0(%arg0: i32) -> (i32, i32) {
    %c0_i32 = arith.constant 0 : i32
    %c0_i32_0 = arith.constant 0 : i32
    return %arg0, %c0_i32 : i32, i32
  }
  func.func @transform_1(%arg0: i32) -> (i32, i32) {
    %c0_i32 = arith.constant 0 : i32
    %c0_i32_0 = arith.constant 0 : i32
    return %arg0, %c0_i32 : i32, i32
  }
  func.func @transform_2(%arg0: i32) -> (i32, i32) {
    %c0_i32 = arith.constant 0 : i32
    %c0_i32_0 = arith.constant 0 : i32
    return %arg0, %c0_i32 : i32, i32
  }
  func.func @transform_3(%arg0: i32) -> (i32, i32) {
    %c0_i32 = arith.constant 0 : i32
    %c0_i32_0 = arith.constant 0 : i32
    %c0_i32_1 = arith.constant 0 : i32
    return %c0_i32, %c0_i32_0 : i32, i32
  }
  func.func @transform_4(%arg0: i32) -> (i32, i32) {
    %c0_i32 = arith.constant 0 : i32
    %c0_i32_0 = arith.constant 0 : i32
    %c0_i32_1 = arith.constant 0 : i32
    return %c0_i32, %c0_i32_0 : i32, i32
  }
  func.func @transform_5(%arg0: i32) -> (i32, i32) {
    %c0_i32 = arith.constant 0 : i32
    %c0_i32_0 = arith.constant 0 : i32
    %c0_i32_1 = arith.constant 0 : i32
    return %c0_i32, %c0_i32_0 : i32, i32
  }
  func.func @transform_6(%arg0: i32) -> (i32, i32) {
    %c0_i32 = arith.constant 0 : i32
    %c0_i32_0 = arith.constant 0 : i32
    %c0_i32_1 = arith.constant 0 : i32
    return %c0_i32, %c0_i32_0 : i32, i32
  }
  func.func @transform_7(%arg0: i32) -> (i32, i32) {
    %c0_i32 = arith.constant 0 : i32
    %c0_i32_0 = arith.constant 0 : i32
    %c0_i32_1 = arith.constant 0 : i32
    return %c0_i32, %c0_i32_0 : i32, i32
  }
  func.func @transform_8(%arg0: i32) -> (i32, i32) {
    %c0_i32 = arith.constant 0 : i32
    %c0_i32_0 = arith.constant 0 : i32
    %c0_i32_1 = arith.constant 0 : i32
    return %c0_i32, %c0_i32_0 : i32, i32
  }
  func.func @transform_9(%arg0: i32) -> (i32, i32) {
    %c0_i32 = arith.constant 0 : i32
    %c0_i32_0 = arith.constant 0 : i32
    %c0_i32_1 = arith.constant 0 : i32
    return %c0_i32, %c0_i32_0 : i32, i32
  }
  func.func @transform_10(%arg0: i32) -> (i32, i32) {
    %c0_i32 = arith.constant 0 : i32
    %c0_i32_0 = arith.constant 0 : i32
    %c0_i32_1 = arith.constant 0 : i32
    return %c0_i32, %c0_i32_0 : i32, i32
  }
  func.func @transform_11(%arg0: i32) -> (i32, i32) {
    %c0_i32 = arith.constant 0 : i32
    %c0_i32_0 = arith.constant 0 : i32
    %c0_i32_1 = arith.constant 0 : i32
    return %c0_i32, %c0_i32_0 : i32, i32
  }
  func.func @transform_12(%arg0: i32) -> (i32, i32) {
    %c0_i32 = arith.constant 0 : i32
    %c0_i32_0 = arith.constant 0 : i32
    %c0_i32_1 = arith.constant 0 : i32
    return %c0_i32, %c0_i32_0 : i32, i32
  }
  func.func @transform_13(%arg0: i32) -> (i32, i32) {
    %c0_i32 = arith.constant 0 : i32
    %c0_i32_0 = arith.constant 0 : i32
    return %arg0, %c0_i32 : i32, i32
  }
  func.func @transform_14(%arg0: i32) -> (i32, i32) {
    %c0_i32 = arith.constant 0 : i32
    %c0_i32_0 = arith.constant 0 : i32
    return %arg0, %c0_i32 : i32, i32
  }
}

</mosaic_0001>

<llo_original>
// kernel: node_edge_block_forward.1
$region0: #{node_edge_block_forward.1}
  #allocation0 [shape = 'u32[]', space=smem, size = 0x4, offset = 0x4, fixed_abs, tag = 'smem constant byte address 0x4 - core index']
  #allocation1 [shape = 'u32[144,128]{1,0:T(1,128)}', space=vmem, size = 0x12000, scoped, tag = 'internal scratch']
  %s0 = inlined_call_operand.vmem [shape: bf16[32,64], index: 0, kind: input, shape index: {}]
  %s1 = inlined_call_operand.vmem [shape: bf16[256,32], index: 1, kind: input, shape index: {}]
  %s2 = inlined_call_operand.vmem [shape: f32[32,1], index: 2, kind: input, shape index: {}]
  %s3 = inlined_call_operand.vmem [shape: bf16[64,192], index: 3, kind: input, shape index: {}]
  %s4 = inlined_call_operand.vmem [shape: f32[1,192], index: 4, kind: input, shape index: {}]
  %s5 = inlined_call_operand.vmem [shape: bf16[32,128], index: 5, kind: input, shape index: {}]
  %s6 = inlined_call_operand.vmem [shape: f32[1,128], index: 6, kind: input, shape index: {}]
  %s7 = inlined_call_operand.vmem [shape: bf16[64,32], index: 7, kind: input, shape index: {}]
  %s8 = inlined_call_operand.vmem [shape: f32[1,32], index: 8, kind: input, shape index: {}]
  %s9 = inlined_call_operand.vmem [shape: bf16[256,32], index: 9, kind: input, shape index: {}]
  %s10 = inlined_call_operand.vmem [shape: f32[1,32], index: 10, kind: input, shape index: {}]
  %s11 = inlined_call_operand.vmem [shape: bf16[64,64], index: 11, kind: input, shape index: {}]
  %s12 = inlined_call_operand.vmem [shape: f32[1,64], index: 12, kind: input, shape index: {}]
  %s13 = inlined_call_operand.hbm [shape: f32[32,64], index: 13, kind: output, shape index: {0}]
  %s14 = inlined_call_operand.hbm [shape: f32[32,32], index: 14, kind: output, shape index: {1}]
  %15 = xla_tuple %s13, %s14
  %s16 = sld [smem:[#allocation0]]
  $region93: #{node_edge_block_forward.1} parent=0
    _
  %s18 = ssub.s32 1, %s16
  %s19 = scalar_select 0, %s18, %s16
  $region1: #{node_edge_block_forward.1} parent=0
    #allocation2 [shape = 'u8[16384]{0}', space=vmem, size = 0x4000, scoped, tag = 'output window, operand 0']
    #allocation3 [shape = 's32[2]{0}', space=sflag, size = 0x8, scoped, tag = 'scoped memory for node_edge_block_forward.1']
    #allocation4 [shape = 'u8[16384]{0}', space=vmem, size = 0x4000, scoped, tag = 'output window, operand 1']
    #allocation5 [shape = 's32[2]{0}', space=sflag, size = 0x8, scoped, tag = 'scoped memory for node_edge_block_forward.1']
    %20 = vsyncpa [#allocation3], 0
    %s21 = scalar_lea.sflag [#allocation3], 1
    %22 = vsyncpa %s21, 0
    %23 = vsyncpa [#allocation5], 0
    %s24 = scalar_lea.sflag [#allocation5], 1
    %25 = vsyncpa %s24, 0
    loop: start=0, step=1, limit=4
    $region2: #{node_edge_block_forward.1} parent=1 // loop_pre_header
      _
    $region3: #{node_edge_block_forward.1} parent=1 // loop_header
      %s27 = sphi 0, %s31
      %p28 = scmp.ge.s32.totalorder %s27, 4
      %s37 = sphi 0, %s39
      %s40 = sphi 0, %s37
      %s41 = sphi 0, %s40
      %s57 = sphi 0, %s41
      %s63 = sphi 0, %s65
      %s66 = sphi 0, %s63
      %s67 = sphi 0, %s66
      %s83 = sphi 0, %s67
      %s89 = sphi 0, %s91
      %s92 = sphi 0, %s89
      %s93 = sphi 0, %s92
      %s109 = sphi 0, %s93
      %s113 = sphi 0, %s113
      %s115 = sphi 0, %s113
      %s116 = sphi 0, %s115
      %s130 = sphi 0, %s116
      %s134 = sphi 0, %s134
      %s136 = sphi 0, %s134
      %s137 = sphi 0, %s136
      %s151 = sphi 0, %s137
      %s155 = sphi 0, %s155
      %s157 = sphi 0, %s155
      %s158 = sphi 0, %s157
      %s172 = sphi 0, %s158
      %s176 = sphi 0, %s176
      %s178 = sphi 0, %s176
      %s179 = sphi 0, %s178
      %s193 = sphi 0, %s179
      %s197 = sphi 0, %s197
      %s199 = sphi 0, %s197
      %s200 = sphi 0, %s199
      %s214 = sphi 0, %s200
      %s218 = sphi 0, %s218
      %s220 = sphi 0, %s218
      %s221 = sphi 0, %s220
      %s235 = sphi 0, %s221
      %s239 = sphi 0, %s239
      %s241 = sphi 0, %s239
      %s242 = sphi 0, %s241
      %s256 = sphi 0, %s242
      %s260 = sphi 0, %s260
      %s262 = sphi 0, %s260
      %s263 = sphi 0, %s262
      %s277 = sphi 0, %s263
      %s281 = sphi 0, %s281
      %s283 = sphi 0, %s281
      %s284 = sphi 0, %s283
      %s298 = sphi 0, %s284
      %s302 = sphi 0, %s302
      %s304 = sphi 0, %s302
      %s305 = sphi 0, %s304
      %s319 = sphi 0, %s305
      %s325 = sphi 0, %s327
      %s328 = sphi 0, %s325
      %s329 = sphi 0, %s328
      %s345 = sphi 0, %s329
      %s351 = sphi 0, %s353
      %s354 = sphi 0, %s351
      %s355 = sphi 0, %s354
      %s371 = sphi 0, %s355
    $region4: #{node_edge_block_forward.1} parent=1 // loop_header_branch
      %30 = sbr.rel (%p28) target = $region8
    $region5: #{node_edge_block_forward.1} parent=1 // loop_body
      %s32 = ssub.s32 %s27, 1
      %s33 = ssub.s32 %s27, 2
      %s34 = sadd.s32 %s27, 1
      %s35 = ssub.s32 %s27, %s34
      %p36 = scmp.eq.s32.totalorder %s35, 0
      %s38 = sadd.s32 %s37, 1
      %s39 = scalar_select %p36, %s37, %s38
      %p42 = pneg %p36
      %p43 = scmp.eq.s32.totalorder %s27, 1
      %p44 = por %p42, %p43
      %p45 = scmp.ne.s32.totalorder %s37, %s40
      %p46 = scmp.eq.s32.totalorder %s27, 0
      %p47 = por %p45, %p46
      %p48 = scmp.ne.s32.totalorder %s37, %s40
      %p49 = scmp.eq.s32.totalorder %s32, 1
      %p50 = por %p48, %p49
      %p51 = scmp.ne.s32.totalorder %s40, %s41
      %p52 = scmp.eq.s32.totalorder %s32, 0
      %p53 = por %p51, %p52
      %p54 = scmp.ne.s32.totalorder %s40, %s41
      %p55 = scmp.eq.s32.totalorder %s33, 1
      %p56 = por %p54, %p55
      %p58 = scmp.ne.s32.totalorder %s41, %s57
      %p59 = scmp.eq.s32.totalorder %s33, 0
      %p60 = por %p58, %p59
      %s61 = ssub.s32 %s27, %s34
      %p62 = scmp.eq.s32.totalorder %s61, 0
      %s64 = sadd.s32 %s63, 1
      %s65 = scalar_select %p62, %s63, %s64
      %p68 = pneg %p62
      %p69 = scmp.eq.s32.totalorder %s27, 1
      %p70 = por %p68, %p69
      %p71 = scmp.ne.s32.totalorder %s63, %s66
      %p72 = scmp.eq.s32.totalorder %s27, 0
      %p73 = por %p71, %p72
      %p74 = scmp.ne.s32.totalorder %s63, %s66
      %p75 = scmp.eq.s32.totalorder %s32, 1
      %p76 = por %p74, %p75
      %p77 = scmp.ne.s32.totalorder %s66, %s67
      %p78 = scmp.eq.s32.totalorder %s32, 0
      %p79 = por %p77, %p78
      %p80 = scmp.ne.s32.totalorder %s66, %s67
      %p81 = scmp.eq.s32.totalorder %s33, 1
      %p82 = por %p80, %p81
      %p84 = scmp.ne.s32.totalorder %s67, %s83
      %p85 = scmp.eq.s32.totalorder %s33, 0
      %p86 = por %p84, %p85
      %s87 = ssub.s32 %s27, %s34
      %p88 = scmp.eq.s32.totalorder %s87, 0
      %s90 = sadd.s32 %s89, 1
      %s91 = scalar_select %p88, %s89, %s90
      %p94 = pneg %p88
      %p95 = scmp.eq.s32.totalorder %s27, 1
      %p96 = por %p94, %p95
      %p97 = scmp.ne.s32.totalorder %s89, %s92
      %p98 = scmp.eq.s32.totalorder %s27, 0
      %p99 = por %p97, %p98
      %p100 = scmp.ne.s32.totalorder %s89, %s92
      %p101 = scmp.eq.s32.totalorder %s32, 1
      %p102 = por %p100, %p101
      %p103 = scmp.ne.s32.totalorder %s92, %s93
      %p104 = scmp.eq.s32.totalorder %s32, 0
      %p105 = por %p103, %p104
      %p106 = scmp.ne.s32.totalorder %s92, %s93
      %p107 = scmp.eq.s32.totalorder %s33, 1
      %p108 = por %p106, %p107
      %p110 = scmp.ne.s32.totalorder %s93, %s109
      %p111 = scmp.eq.s32.totalorder %s33, 0
      %p112 = por %p110, %p111
      %s114 = sadd.s32 %s113, 1
      %p117 = scmp.eq.s32.totalorder %s27, 1
      %p118 = scmp.ne.s32.totalorder %s113, %s115
      %p119 = scmp.eq.s32.totalorder %s27, 0
      %p120 = por %p118, %p119
      %p121 = scmp.ne.s32.totalorder %s113, %s115
      %p122 = scmp.eq.s32.totalorder %s32, 1
      %p123 = por %p121, %p122
      %p124 = scmp.ne.s32.totalorder %s115, %s116
      %p125 = scmp.eq.s32.totalorder %s32, 0
      %p126 = por %p124, %p125
      %p127 = scmp.ne.s32.totalorder %s115, %s116
      %p128 = scmp.eq.s32.totalorder %s33, 1
      %p129 = por %p127, %p128
      %p131 = scmp.ne.s32.totalorder %s116, %s130
      %p132 = scmp.eq.s32.totalorder %s33, 0
      %p133 = por %p131, %p132
      %s135 = sadd.s32 %s134, 1
      %p138 = scmp.eq.s32.totalorder %s27, 1
      %p139 = scmp.ne.s32.totalorder %s134, %s136
      %p140 = scmp.eq.s32.totalorder %s27, 0
      %p141 = por %p139, %p140
      %p142 = scmp.ne.s32.totalorder %s134, %s136
      %p143 = scmp.eq.s32.totalorder %s32, 1
      %p144 = por %p142, %p143
      %p145 = scmp.ne.s32.totalorder %s136, %s137
      %p146 = scmp.eq.s32.totalorder %s32, 0
      %p147 = por %p145, %p146
      %p148 = scmp.ne.s32.totalorder %s136, %s137
      %p149 = scmp.eq.s32.totalorder %s33, 1
      %p150 = por %p148, %p149
      %p152 = scmp.ne.s32.totalorder %s137, %s151
      %p153 = scmp.eq.s32.totalorder %s33, 0
      %p154 = por %p152, %p153
      %s156 = sadd.s32 %s155, 1
      %p159 = scmp.eq.s32.totalorder %s27, 1
      %p160 = scmp.ne.s32.totalorder %s155, %s157
      %p161 = scmp.eq.s32.totalorder %s27, 0
      %p162 = por %p160, %p161
      %p163 = scmp.ne.s32.totalorder %s155, %s157
      %p164 = scmp.eq.s32.totalorder %s32, 1
      %p165 = por %p163, %p164
      %p166 = scmp.ne.s32.totalorder %s157, %s158
      %p167 = scmp.eq.s32.totalorder %s32, 0
      %p168 = por %p166, %p167
      %p169 = scmp.ne.s32.totalorder %s157, %s158
      %p170 = scmp.eq.s32.totalorder %s33, 1
      %p171 = por %p169, %p170
      %p173 = scmp.ne.s32.totalorder %s158, %s172
      %p174 = scmp.eq.s32.totalorder %s33, 0
      %p175 = por %p173, %p174
      %s177 = sadd.s32 %s176, 1
      %p180 = scmp.eq.s32.totalorder %s27, 1
      %p181 = scmp.ne.s32.totalorder %s176, %s178
      %p182 = scmp.eq.s32.totalorder %s27, 0
      %p183 = por %p181, %p182
      %p184 = scmp.ne.s32.totalorder %s176, %s178
      %p185 = scmp.eq.s32.totalorder %s32, 1
      %p186 = por %p184, %p185
      %p187 = scmp.ne.s32.totalorder %s178, %s179
      %p188 = scmp.eq.s32.totalorder %s32, 0
      %p189 = por %p187, %p188
      %p190 = scmp.ne.s32.totalorder %s178, %s179
      %p191 = scmp.eq.s32.totalorder %s33, 1
      %p192 = por %p190, %p191
      %p194 = scmp.ne.s32.totalorder %s179, %s193
      %p195 = scmp.eq.s32.totalorder %s33, 0
      %p196 = por %p194, %p195
      %s198 = sadd.s32 %s197, 1
      %p201 = scmp.eq.s32.totalorder %s27, 1
      %p202 = scmp.ne.s32.totalorder %s197, %s199
      %p203 = scmp.eq.s32.totalorder %s27, 0
      %p204 = por %p202, %p203
      %p205 = scmp.ne.s32.totalorder %s197, %s199
      %p206 = scmp.eq.s32.totalorder %s32, 1
      %p207 = por %p205, %p206
      %p208 = scmp.ne.s32.totalorder %s199, %s200
      %p209 = scmp.eq.s32.totalorder %s32, 0
      %p210 = por %p208, %p209
      %p211 = scmp.ne.s32.totalorder %s199, %s200
      %p212 = scmp.eq.s32.totalorder %s33, 1
      %p213 = por %p211, %p212
      %p215 = scmp.ne.s32.totalorder %s200, %s214
      %p216 = scmp.eq.s32.totalorder %s33, 0
      %p217 = por %p215, %p216
      %s219 = sadd.s32 %s218, 1
      %p222 = scmp.eq.s32.totalorder %s27, 1
      %p223 = scmp.ne.s32.totalorder %s218, %s220
      %p224 = scmp.eq.s32.totalorder %s27, 0
      %p225 = por %p223, %p224
      %p226 = scmp.ne.s32.totalorder %s218, %s220
      %p227 = scmp.eq.s32.totalorder %s32, 1
      %p228 = por %p226, %p227
      %p229 = scmp.ne.s32.totalorder %s220, %s221
      %p230 = scmp.eq.s32.totalorder %s32, 0
      %p231 = por %p229, %p230
      %p232 = scmp.ne.s32.totalorder %s220, %s221
      %p233 = scmp.eq.s32.totalorder %s33, 1
      %p234 = por %p232, %p233
      %p236 = scmp.ne.s32.totalorder %s221, %s235
      %p237 = scmp.eq.s32.totalorder %s33, 0
      %p238 = por %p236, %p237
      %s240 = sadd.s32 %s239, 1
      %p243 = scmp.eq.s32.totalorder %s27, 1
      %p244 = scmp.ne.s32.totalorder %s239, %s241
      %p245 = scmp.eq.s32.totalorder %s27, 0
      %p246 = por %p244, %p245
      %p247 = scmp.ne.s32.totalorder %s239, %s241
      %p248 = scmp.eq.s32.totalorder %s32, 1
      %p249 = por %p247, %p248
      %p250 = scmp.ne.s32.totalorder %s241, %s242
      %p251 = scmp.eq.s32.totalorder %s32, 0
      %p252 = por %p250, %p251
      %p253 = scmp.ne.s32.totalorder %s241, %s242
      %p254 = scmp.eq.s32.totalorder %s33, 1
      %p255 = por %p253, %p254
      %p257 = scmp.ne.s32.totalorder %s242, %s256
      %p258 = scmp.eq.s32.totalorder %s33, 0
      %p259 = por %p257, %p258
      %s261 = sadd.s32 %s260, 1
      %p264 = scmp.eq.s32.totalorder %s27, 1
      %p265 = scmp.ne.s32.totalorder %s260, %s262
      %p266 = scmp.eq.s32.totalorder %s27, 0
      %p267 = por %p265, %p266
      %p268 = scmp.ne.s32.totalorder %s260, %s262
      %p269 = scmp.eq.s32.totalorder %s32, 1
      %p270 = por %p268, %p269
      %p271 = scmp.ne.s32.totalorder %s262, %s263
      %p272 = scmp.eq.s32.totalorder %s32, 0
      %p273 = por %p271, %p272
      %p274 = scmp.ne.s32.totalorder %s262, %s263
      %p275 = scmp.eq.s32.totalorder %s33, 1
      %p276 = por %p274, %p275
      %p278 = scmp.ne.s32.totalorder %s263, %s277
      %p279 = scmp.eq.s32.totalorder %s33, 0
      %p280 = por %p278, %p279
      %s282 = sadd.s32 %s281, 1
      %p285 = scmp.eq.s32.totalorder %s27, 1
      %p286 = scmp.ne.s32.totalorder %s281, %s283
      %p287 = scmp.eq.s32.totalorder %s27, 0
      %p288 = por %p286, %p287
      %p289 = scmp.ne.s32.totalorder %s281, %s283
      %p290 = scmp.eq.s32.totalorder %s32, 1
      %p291 = por %p289, %p290
      %p292 = scmp.ne.s32.totalorder %s283, %s284
      %p293 = scmp.eq.s32.totalorder %s32, 0
      %p294 = por %p292, %p293
      %p295 = scmp.ne.s32.totalorder %s283, %s284
      %p296 = scmp.eq.s32.totalorder %s33, 1
      %p297 = por %p295, %p296
      %p299 = scmp.ne.s32.totalorder %s284, %s298
      %p300 = scmp.eq.s32.totalorder %s33, 0
      %p301 = por %p299, %p300
      %s303 = sadd.s32 %s302, 1
      %p306 = scmp.eq.s32.totalorder %s27, 1
      %p307 = scmp.ne.s32.totalorder %s302, %s304
      %p308 = scmp.eq.s32.totalorder %s27, 0
      %p309 = por %p307, %p308
      %p310 = scmp.ne.s32.totalorder %s302, %s304
      %p311 = scmp.eq.s32.totalorder %s32, 1
      %p312 = por %p310, %p311
      %p313 = scmp.ne.s32.totalorder %s304, %s305
      %p314 = scmp.eq.s32.totalorder %s32, 0
      %p315 = por %p313, %p314
      %p316 = scmp.ne.s32.totalorder %s304, %s305
      %p317 = scmp.eq.s32.totalorder %s33, 1
      %p318 = por %p316, %p317
      %p320 = scmp.ne.s32.totalorder %s305, %s319
      %p321 = scmp.eq.s32.totalorder %s33, 0
      %p322 = por %p320, %p321
      %s323 = ssub.s32 %s27, %s34
      %p324 = scmp.eq.s32.totalorder %s323, 0
      %s326 = sadd.s32 %s325, 1
      %s327 = scalar_select %p324, %s325, %s326
      %p330 = pneg %p324
      %p331 = scmp.eq.s32.totalorder %s27, 1
      %p332 = por %p330, %p331
      %p333 = scmp.ne.s32.totalorder %s325, %s328
      %p334 = scmp.eq.s32.totalorder %s27, 0
      %p335 = por %p333, %p334
      %p336 = scmp.ne.s32.totalorder %s325, %s328
      %p337 = scmp.eq.s32.totalorder %s32, 1
      %p338 = por %p336, %p337
      %p339 = scmp.ne.s32.totalorder %s328, %s329
      %p340 = scmp.eq.s32.totalorder %s32, 0
      %p341 = por %p339, %p340
      %p342 = scmp.ne.s32.totalorder %s328, %s329
      %p343 = scmp.eq.s32.totalorder %s33, 1
      %p344 = por %p342, %p343
      %p346 = scmp.ne.s32.totalorder %s329, %s345
      %p347 = scmp.eq.s32.totalorder %s33, 0
      %p348 = por %p346, %p347
      %s349 = ssub.s32 %s27, %s34
      %p350 = scmp.eq.s32.totalorder %s349, 0
      %s352 = sadd.s32 %s351, 1
      %s353 = scalar_select %p350, %s351, %s352
      %p356 = pneg %p350
      %p357 = scmp.eq.s32.totalorder %s27, 1
      %p358 = por %p356, %p357
      %p359 = scmp.ne.s32.totalorder %s351, %s354
      %p360 = scmp.eq.s32.totalorder %s27, 0
      %p361 = por %p359, %p360
      %p362 = scmp.ne.s32.totalorder %s351, %s354
      %p363 = scmp.eq.s32.totalorder %s32, 1
      %p364 = por %p362, %p363
      %p365 = scmp.ne.s32.totalorder %s354, %s355
      %p366 = scmp.eq.s32.totalorder %s32, 0
      %p367 = por %p365, %p366
      %p368 = scmp.ne.s32.totalorder %s354, %s355
      %p369 = scmp.eq.s32.totalorder %s33, 1
      %p370 = por %p368, %p369
      %p372 = scmp.ne.s32.totalorder %s355, %s371
      %p373 = scmp.eq.s32.totalorder %s33, 0
      %p374 = por %p372, %p373
      %p375 = scmp.le.s32.totalorder 1, %s27
      %p376 = scmp.lt.s32.totalorder %s27, 3
      %p377 = pnand %p375, %p376
      %p378 = pneg %p377
      // Predicated region
      $region9: #{node_edge_block_forward.1} parent=5 // pred_check
        _
      $region10: #{node_edge_block_forward.1} parent=5 // pred_check_branch
        %380 = sbr.rel (%p377) target = $region12
      $region11: #{node_edge_block_forward.1} parent=5 // pred_region
        %s381 = ssub.s32 %s27, 1
        // Predicated region
        $region13: #{node_edge_block_forward.1} parent=11 // pred_check
          %p382 = pneg %p126
        $region14: #{node_edge_block_forward.1} parent=11 // pred_check_branch
          %384 = sbr.rel (%p382) target = $region16
        $region15: #{node_edge_block_forward.1} parent=11 // pred_region
          _
        $region16: #{node_edge_block_forward.1} parent=11 // pred_fallthru
          _
        // Predicated region
        $region17: #{node_edge_block_forward.1} parent=11 // pred_check
          %p385 = pneg %p147
        $region18: #{node_edge_block_forward.1} parent=11 // pred_check_branch
          %387 = sbr.rel (%p385) target = $region20
        $region19: #{node_edge_block_forward.1} parent=11 // pred_region
          _
        $region20: #{node_edge_block_forward.1} parent=11 // pred_fallthru
          _
        // Predicated region
        $region21: #{node_edge_block_forward.1} parent=11 // pred_check
          %p388 = pneg %p168
        $region22: #{node_edge_block_forward.1} parent=11 // pred_check_branch
          %390 = sbr.rel (%p388) target = $region24
        $region23: #{node_edge_block_forward.1} parent=11 // pred_region
          _
        $region24: #{node_edge_block_forward.1} parent=11 // pred_fallthru
          _
        // Predicated region
        $region25: #{node_edge_block_forward.1} parent=11 // pred_check
          %p391 = pneg %p189
        $region26: #{node_edge_block_forward.1} parent=11 // pred_check_branch
          %393 = sbr.rel (%p391) target = $region28
        $region27: #{node_edge_block_forward.1} parent=11 // pred_region
          _
        $region28: #{node_edge_block_forward.1} parent=11 // pred_fallthru
          _
        // Predicated region
        $region29: #{node_edge_block_forward.1} parent=11 // pred_check
          %p394 = pneg %p210
        $region30: #{node_edge_block_forward.1} parent=11 // pred_check_branch
          %396 = sbr.rel (%p394) target = $region32
        $region31: #{node_edge_block_forward.1} parent=11 // pred_region
          _
        $region32: #{node_edge_block_forward.1} parent=11 // pred_fallthru
          _
        // Predicated region
        $region33: #{node_edge_block_forward.1} parent=11 // pred_check
          %p397 = pneg %p231
        $region34: #{node_edge_block_forward.1} parent=11 // pred_check_branch
          %399 = sbr.rel (%p397) target = $region36
        $region35: #{node_edge_block_forward.1} parent=11 // pred_region
          _
        $region36: #{node_edge_block_forward.1} parent=11 // pred_fallthru
          _
        // Predicated region
        $region37: #{node_edge_block_forward.1} parent=11 // pred_check
          %p400 = pneg %p252
        $region38: #{node_edge_block_forward.1} parent=11 // pred_check_branch
          %402 = sbr.rel (%p400) target = $region40
        $region39: #{node_edge_block_forward.1} parent=11 // pred_region
          _
        $region40: #{node_edge_block_forward.1} parent=11 // pred_fallthru
          _
        // Predicated region
        $region41: #{node_edge_block_forward.1} parent=11 // pred_check
          %p403 = pneg %p273
        $region42: #{node_edge_block_forward.1} parent=11 // pred_check_branch
          %405 = sbr.rel (%p403) target = $region44
        $region43: #{node_edge_block_forward.1} parent=11 // pred_region
          _
        $region44: #{node_edge_block_forward.1} parent=11 // pred_fallthru
          _
        // Predicated region
        $region45: #{node_edge_block_forward.1} parent=11 // pred_check
          %p406 = pneg %p294
        $region46: #{node_edge_block_forward.1} parent=11 // pred_check_branch
          %408 = sbr.rel (%p406) target = $region48
        $region47: #{node_edge_block_forward.1} parent=11 // pred_region
          _
        $region48: #{node_edge_block_forward.1} parent=11 // pred_fallthru
          _
        // Predicated region
        $region49: #{node_edge_block_forward.1} parent=11 // pred_check
          %p409 = pneg %p315
        $region50: #{node_edge_block_forward.1} parent=11 // pred_check_branch
          %411 = sbr.rel (%p409) target = $region52
        $region51: #{node_edge_block_forward.1} parent=11 // pred_region
          _
        $region52: #{node_edge_block_forward.1} parent=11 // pred_fallthru
          _
      $region12: #{node_edge_block_forward.1} parent=5 // pred_fallthru
        _
      %p412 = scmp.lt.s32.totalorder %s27, 2
      // Predicated region
      $region53: #{node_edge_block_forward.1} parent=5 // pred_check
        %p413 = pneg %p412
      $region54: #{node_edge_block_forward.1} parent=5 // pred_check_branch
        %415 = sbr.rel (%p413) target = $region56
      $region55: #{node_edge_block_forward.1} parent=5 // pred_region
        // Predicated region
        $region57: #{node_edge_block_forward.1} parent=55 // pred_check
          %p416 = pneg %p47
        $region58: #{node_edge_block_forward.1} parent=55 // pred_check_branch
          %418 = sbr.rel (%p416) target = $region60
        $region59: #{node_edge_block_forward.1} parent=55 // pred_region
          %s419 = smul.u32 2, %s27
          %p420 = scmp.lt.s32.totalorder %s419, 3
          %s421 = scalar_select %p420, %s419, 3
          %s422 = smul.addr %s421, 4
          %s423 = scalar_lea.vmem %s0, %s422
          %s424 = smul.u32 2, %s27
        $region60: #{node_edge_block_forward.1} parent=55 // pred_fallthru
          _
        // Predicated region
        $region61: #{node_edge_block_forward.1} parent=55 // pred_check
          %p425 = pneg %p73
        $region62: #{node_edge_block_forward.1} parent=55 // pred_check_branch
          %427 = sbr.rel (%p425) target = $region64
        $region63: #{node_edge_block_forward.1} parent=55 // pred_region
          %s428 = smul.u32 16, %s27
          %p429 = scmp.lt.s32.totalorder %s428, 31
          %s430 = scalar_select %p429, %s428, 31
          %s431 = smul.addr %s430, 4
          %s432 = scalar_lea.vmem %s1, %s431
          %s433 = smul.u32 16, %s27
        $region64: #{node_edge_block_forward.1} parent=55 // pred_fallthru
          _
        // Predicated region
        $region65: #{node_edge_block_forward.1} parent=55 // pred_check
          %p434 = pneg %p99
        $region66: #{node_edge_block_forward.1} parent=55 // pred_check_branch
          %436 = sbr.rel (%p434) target = $region68
        $region67: #{node_edge_block_forward.1} parent=55 // pred_region
          %s437 = smul.u32 2, %s27
          %p438 = scmp.lt.s32.totalorder %s437, 3
          %s439 = scalar_select %p438, %s437, 3
          %s440 = smul.addr %s439, 8
          %s441 = scalar_lea.vmem %s2, %s440
          %s442 = smul.u32 2, %s27
        $region68: #{node_edge_block_forward.1} parent=55 // pred_fallthru
          _
      $region56: #{node_edge_block_forward.1} parent=5 // pred_fallthru
        _
      %p443 = scmp.le.s32.totalorder 1, %s27
      %p444 = scmp.lt.s32.totalorder %s27, 3
      %p445 = pnand %p443, %p444
      %p446 = pneg %p445
      // Predicated region
      $region69: #{node_edge_block_forward.1} parent=5 // pred_check
        _
      $region70: #{node_edge_block_forward.1} parent=5 // pred_check_branch
        %448 = sbr.rel (%p445) target = $region72
      $region71: #{node_edge_block_forward.1} parent=5 // pred_region
        %s449 = ssub.s32 %s27, 1
        %s450 = smul.u32 2, %s32
        %p451 = scmp.lt.s32.totalorder %s450, 3
        %s452 = scalar_select %p451, %s450, 3
        %s453 = smul.addr %s452, 4
        %s454 = scalar_lea.vmem %s0, %s453
        %p455 = pneg %p53
        %p456 = pneg %p50
        %s457 = smul.u32 16, %s32
        %p458 = scmp.lt.s32.totalorder %s457, 31
        %s459 = scalar_select %p458, %s457, 31
        %s460 = smul.addr %s459, 4
        %s461 = scalar_lea.vmem %s1, %s460
        %p462 = pneg %p79
        %p463 = pneg %p76
        %s464 = smul.u32 2, %s32
        %p465 = scmp.lt.s32.totalorder %s464, 3
        %s466 = scalar_select %p465, %s464, 3
        %s467 = smul.addr %s466, 8
        %s468 = scalar_lea.vmem %s2, %s467
        %p469 = pneg %p105
        %p470 = pneg %p102
        %p471 = pneg %p126
        %p472 = pneg %p123
        %p473 = pneg %p147
        %p474 = pneg %p144
        %p475 = pneg %p168
        %p476 = pneg %p165
        %p477 = pneg %p189
        %p478 = pneg %p186
        %p479 = pneg %p210
        %p480 = pneg %p207
        %p481 = pneg %p231
        %p482 = pneg %p228
        %p483 = pneg %p252
        %p484 = pneg %p249
        %p485 = pneg %p273
        %p486 = pneg %p270
        %p487 = pneg %p294
        %p488 = pneg %p291
        %p489 = pneg %p315
        %p490 = pneg %p312
        %p491 = pneg %p341
        %p492 = pneg %p338
        %s493 = sand.u32 %s328, 1
        %s494 = scalar_lea.sflag [#allocation3], %s493
        %s495 = sand.u32 %s328, 1
        %s496 = smul.addr %s495, 16
        %s497 = scalar_lea.vmem [#allocation2], %s496
        %p498 = pneg %p367
        %p499 = pneg %p364
        %s500 = sand.u32 %s354, 1
        %s501 = scalar_lea.sflag [#allocation5], %s500
        %s502 = sand.u32 %s354, 1
        %s503 = smul.addr %s502, 16
        %s504 = scalar_lea.vmem [#allocation4], %s503
        %s505 = smul.u32 2, %s32
        %p506 = scmp.lt.s32.totalorder %s505, 3
        %s507 = scalar_select %p506, %s505, 3
        %s508 = smul.addr %s507, 4
        %s509 = scalar_lea.vmem %s0, %s508
        %s510 = smul.u32 2, %s32
        %s511 = smul.u32 16, %s32
        %p512 = scmp.lt.s32.totalorder %s511, 31
        %s513 = scalar_select %p512, %s511, 31
        %s514 = smul.addr %s513, 4
        %s515 = scalar_lea.vmem %s1, %s514
        %s516 = smul.u32 16, %s32
        %s517 = smul.u32 2, %s32
        %p518 = scmp.lt.s32.totalorder %s517, 3
        %s519 = scalar_select %p518, %s517, 3
        %s520 = smul.addr %s519, 8
        %s521 = scalar_lea.vmem %s2, %s520
        %s522 = smul.u32 2, %s32
        %s523 = smul.u32 2, %s32
        %s524 = smul.u32 2, %s32
        %v526 = vld [vmem:[%s509] sm:$0xf]
        %v527 = vld [vmem:[%s509 + $0x4] sm:$0xf]
        %v528 = vld [vmem:[%s515] sm:$0xf]
        %v529 = vld [vmem:[%s515 + $0x4] sm:$0xf]
        %v530 = vld [vmem:[%s515 + $0x8] sm:$0xf]
        %v531 = vld [vmem:[%s515 + $0xc] sm:$0xf]
        %v532 = vld [vmem:[%s515 + $0x10] sm:$0xf]
        %v533 = vld [vmem:[%s515 + $0x14] sm:$0xf]
        %v534 = vld [vmem:[%s515 + $0x18] sm:$0xf]
        %v535 = vld [vmem:[%s515 + $0x1c] sm:$0xf]
        %v536 = vld [vmem:[%s515 + $0x20] sm:$0xf]
        %v537 = vld [vmem:[%s515 + $0x24] sm:$0xf]
        %v538 = vld [vmem:[%s515 + $0x28] sm:$0xf]
        %v539 = vld [vmem:[%s515 + $0x2c] sm:$0xf]
        %v540 = vld [vmem:[%s515 + $0x30] sm:$0xf]
        %v541 = vld [vmem:[%s515 + $0x34] sm:$0xf]
        %v542 = vld [vmem:[%s515 + $0x38] sm:$0xf]
        %v543 = vld [vmem:[%s515 + $0x3c] sm:$0xf]
        %v544 = vld [vmem:[%s521] sm:$0xff]
        %v545 = vld [vmem:[%s521 + $0x8] sm:$0xff]
        %v548 = vcombine.high %v544, %v544
        %v550 = vunpack.c.l.s4 1966171168
        %v551 = vunpack.c.0.s8 %v550
        %v552 = vlaneseq
        %v553 = vshrl.u32 %v552, 7
        %v554 = vsub.s32 %v551, %v553
        %v555 = vrot.slane %v544, %v554
        %v557 = vunpack.c.l.s4 1966171168
        %v558 = vunpack.c.0.s8 %v557
        %v559 = vlaneseq
        %v560 = vshrl.u32 %v559, 7
        %v561 = vsub.s32 %v558, %v560
        %v562 = vrot.slane %v548, %v561
        %v563 = vcombine.high %v555, %v555
        %v564 = vcombine.high %v562, %v562
        %v566 = vunpack.c.l.s4 1966171168
        %v567 = vunpack.c.0.s8 %v566
        %v568 = vlaneseq
        %v569 = vshrl.u32 %v568, 7
        %v570 = vsub.s32 %v567, %v569
        %v571 = vrot.slane %v555, %v570
        %v573 = vunpack.c.l.s4 1966171168
        %v574 = vunpack.c.0.s8 %v573
        %v575 = vlaneseq
        %v576 = vshrl.u32 %v575, 7
        %v577 = vsub.s32 %v574, %v576
        %v578 = vrot.slane %v562, %v577
        %v580 = vunpack.c.l.s4 1966171168
        %v581 = vunpack.c.0.s8 %v580
        %v582 = vlaneseq
        %v583 = vshrl.u32 %v582, 7
        %v584 = vsub.s32 %v581, %v583
        %v585 = vrot.slane %v563, %v584
        %v587 = vunpack.c.l.s4 1966171168
        %v588 = vunpack.c.0.s8 %v587
        %v589 = vlaneseq
        %v590 = vshrl.u32 %v589, 7
        %v591 = vsub.s32 %v588, %v590
        %v592 = vrot.slane %v564, %v591
        %v593 = vcombine.high %v571, %v571
        %v594 = vcombine.high %v578, %v578
        %v595 = vcombine.high %v585, %v585
        %v596 = vcombine.high %v592, %v592
        %v597 = vcombine.high %v545, %v545
        %v599 = vunpack.c.l.s4 1966171168
        %v600 = vunpack.c.0.s8 %v599
        %v601 = vlaneseq
        %v602 = vshrl.u32 %v601, 7
        %v603 = vsub.s32 %v600, %v602
        %v604 = vrot.slane %v545, %v603
        %v606 = vunpack.c.l.s4 1966171168
        %v607 = vunpack.c.0.s8 %v606
        %v608 = vlaneseq
        %v609 = vshrl.u32 %v608, 7
        %v610 = vsub.s32 %v607, %v609
        %v611 = vrot.slane %v597, %v610
        %v612 = vcombine.high %v604, %v604
        %v613 = vcombine.high %v611, %v611
        %v615 = vunpack.c.l.s4 1966171168
        %v616 = vunpack.c.0.s8 %v615
        %v617 = vlaneseq
        %v618 = vshrl.u32 %v617, 7
        %v619 = vsub.s32 %v616, %v618
        %v620 = vrot.slane %v604, %v619
        %v622 = vunpack.c.l.s4 1966171168
        %v623 = vunpack.c.0.s8 %v622
        %v624 = vlaneseq
        %v625 = vshrl.u32 %v624, 7
        %v626 = vsub.s32 %v623, %v625
        %v627 = vrot.slane %v611, %v626
        %v629 = vunpack.c.l.s4 1966171168
        %v630 = vunpack.c.0.s8 %v629
        %v631 = vlaneseq
        %v632 = vshrl.u32 %v631, 7
        %v633 = vsub.s32 %v630, %v632
        %v634 = vrot.slane %v612, %v633
        %v636 = vunpack.c.l.s4 1966171168
        %v637 = vunpack.c.0.s8 %v636
        %v638 = vlaneseq
        %v639 = vshrl.u32 %v638, 7
        %v640 = vsub.s32 %v637, %v639
        %v641 = vrot.slane %v613, %v640
        %v642 = vcombine.high %v620, %v620
        %v643 = vcombine.high %v627, %v627
        %v644 = vcombine.high %v634, %v634
        %v645 = vcombine.high %v641, %v641
        %v646 = vlaneseq
        %v647 = vshrl.u32 %v646, 7
        %v648 = vsub.s32 0, %v647
        %v649 = vrot.slane %v571, %v648
        %v650 = vlaneseq
        %v651 = vshrl.u32 %v650, 7
        %v652 = vsub.s32 0, %v651
        %v653 = vrot.slane %v585, %v652
        %v654 = vlaneseq
        %v655 = vshrl.u32 %v654, 7
        %v656 = vsub.s32 0, %v655
        %v657 = vrot.slane %v593, %v656
        %v658 = vlaneseq
        %v659 = vshrl.u32 %v658, 7
        %v660 = vsub.s32 0, %v659
        %v661 = vrot.slane %v595, %v660
        %v662 = vlaneseq
        %v663 = vshrl.u32 %v662, 7
        %v664 = vsub.s32 0, %v663
        %v665 = vrot.slane %v578, %v664
        %v666 = vlaneseq
        %v667 = vshrl.u32 %v666, 7
        %v668 = vsub.s32 0, %v667
        %v669 = vrot.slane %v592, %v668
        %v670 = vlaneseq
        %v671 = vshrl.u32 %v670, 7
        %v672 = vsub.s32 0, %v671
        %v673 = vrot.slane %v594, %v672
        %v674 = vlaneseq
        %v675 = vshrl.u32 %v674, 7
        %v676 = vsub.s32 0, %v675
        %v677 = vrot.slane %v596, %v676
        %v678 = vlaneseq
        %v679 = vshrl.u32 %v678, 7
        %v680 = vsub.s32 0, %v679
        %v681 = vrot.slane %v620, %v680
        %v682 = vlaneseq
        %v683 = vshrl.u32 %v682, 7
        %v684 = vsub.s32 0, %v683
        %v685 = vrot.slane %v634, %v684
        %v686 = vlaneseq
        %v687 = vshrl.u32 %v686, 7
        %v688 = vsub.s32 0, %v687
        %v689 = vrot.slane %v642, %v688
        %v690 = vlaneseq
        %v691 = vshrl.u32 %v690, 7
        %v692 = vsub.s32 0, %v691
        %v693 = vrot.slane %v644, %v692
        %v694 = vlaneseq
        %v695 = vshrl.u32 %v694, 7
        %v696 = vsub.s32 0, %v695
        %v697 = vrot.slane %v627, %v696
        %v698 = vlaneseq
        %v699 = vshrl.u32 %v698, 7
        %v700 = vsub.s32 0, %v699
        %v701 = vrot.slane %v641, %v700
        %v702 = vlaneseq
        %v703 = vshrl.u32 %v702, 7
        %v704 = vsub.s32 0, %v703
        %v705 = vrot.slane %v643, %v704
        %v706 = vlaneseq
        %v707 = vshrl.u32 %v706, 7
        %v708 = vsub.s32 0, %v707
        %v709 = vrot.slane %v645, %v708
        %v726 = vmul.f32 %v649, %v544
        %v727 = vmul.f32 %v653, %v544
        %v728 = vmul.f32 %v657, %v544
        %v729 = vmul.f32 %v661, %v544
        %v730 = vmul.f32 %v665, %v544
        %v731 = vmul.f32 %v669, %v544
        %v732 = vmul.f32 %v673, %v544
        %v733 = vmul.f32 %v677, %v544
        %v734 = vmul.f32 %v681, %v545
        %v735 = vmul.f32 %v685, %v545
        %v736 = vmul.f32 %v689, %v545
        %v737 = vmul.f32 %v693, %v545
        %v738 = vmul.f32 %v697, %v545
        %v739 = vmul.f32 %v701, %v545
        %v740 = vmul.f32 %v705, %v545
        %v741 = vmul.f32 %v709, %v545
        %vm742 = vcmp.ne.f32.partialorder %v544, 0.0
        %vm743 = vcmp.ne.f32.partialorder %v545, 0.0
        %v744 = vsel %vm742, 0.0, -1e+30
        %v745 = vsel %vm743, 0.0, -1e+30
        %v746 = vld [vmem:[%s3] sm:$0xff]
        %v747 = vld [vmem:[%s3 + $0x8] sm:$0xff]
        %v748 = vld [vmem:[%s3 + $0x10] sm:$0xff]
        %v749 = vld [vmem:[%s3 + $0x18] sm:$0xff]
        %v750 = vld [vmem:[%s3 + $0x20] sm:$0xff]
        %v751 = vld [vmem:[%s3 + $0x28] sm:$0xff]
        %v752 = vld [vmem:[%s3 + $0x30] sm:$0xff]
        %v753 = vld [vmem:[%s3 + $0x38] sm:$0xff]
        %v754 = vld [vmem:[%s4] sm:$0x3]
        %v756 = vlaneseq
        %v757 = vshrl.u32 %v756, 7
        %v758 = vsub.s32 0, %v757
        %v759 = vrot.slane %v754, %v758
        %v760 = vlaneseq
        %v761 = vshrl.u32 %v760, 7
        %v762 = vsub.s32 1, %v761
        %v763 = vrot.slane %v754, %v762
        %v768 = vunpack.c.l.b16 %v526
        %v769 = vunpack.c.l.b16 %v527
        %v770 = vpack.c.b16 %v769, %v768
        %v779 = vunpack.c.l.b16 %v746
        %v780 = vunpack.c.h.b16 %v746
        %v781 = vunpack.c.l.b16 %v747
        %v782 = vunpack.c.h.b16 %v747
        %v783 = vunpack.c.l.b16 %v748
        %v784 = vunpack.c.h.b16 %v748
        %v785 = vunpack.c.l.b16 %v749
        %v786 = vunpack.c.h.b16 %v749
        %v787 = vunpack.c.l.b16 %v750
        %v788 = vunpack.c.h.b16 %v750
        %v789 = vunpack.c.l.b16 %v751
        %v790 = vunpack.c.h.b16 %v751
        %v791 = vunpack.c.l.b16 %v752
        %v792 = vunpack.c.h.b16 %v752
        %v793 = vunpack.c.l.b16 %v753
        %v794 = vunpack.c.h.b16 %v753
        %v795 = vpack.c.b16 %v781, %v779
        %v796 = vpack.c.b16 %v782, %v780
        %v797 = vpack.c.b16 %v785, %v783
        %v798 = vpack.c.b16 %v786, %v784
        %v799 = vpack.c.b16 %v789, %v787
        %v800 = vpack.c.b16 %v790, %v788
        %v801 = vpack.c.b16 %v793, %v791
        %v802 = vpack.c.b16 %v794, %v792
        %vm811 = vcmask 523264
        %v813 = vsel %vm811, %v770, 0
        %815 = vmatprep.subr.bf16.mxu0 0
        %816 = vmatpush1.bf16.msra.mxu0 0
        %817 = vmatprep.subr.bf16.mxu0 0
        %818 = vmatpush1.bf16.msra.mxu0 0
        %819 = vmatprep.subr.bf16.mxu0 0
        %820 = vmatpush1.bf16.msra.mxu0 0
        %821 = vmatprep.subr.bf16.mxu0 0
        %822 = vmatpush1.bf16.msra.mxu0 0
        %823 = vmatprep.subr.bf16.mxu0 %v802
        %824 = vmatpush1.bf16.msra.mxu0 %v801
        %825 = vmatprep.subr.bf16.mxu0 %v800
        %826 = vmatpush1.bf16.msra.mxu0 %v799
        %827 = vmatprep.subr.bf16.mxu0 %v798
        %828 = vmatpush1.bf16.msra.mxu0 %v797
        %829 = vmatprep.subr.bf16.mxu0 %v796
        %830 = vmatpush1.bf16.msra.mxu0 %v795
        %831 = vmatprep.subr.bf16.mxu0 0
        %832 = vmatpush2.bf16.msra.mxu0 0
        %833 = vmatprep.subr.bf16.mxu0 0
        %834 = vmatpush2.bf16.msra.mxu0 0
        %835 = vmatprep.subr.bf16.mxu0 0
        %836 = vmatpush2.bf16.msra.mxu0 0
        %837 = vmatprep.subr.bf16.mxu0 0
        %838 = vmatpush2.bf16.msra.mxu0 0
        %839 = vmatprep.subr.bf16.mxu0 0
        %840 = vmatpush2.bf16.msra.mxu0 0
        %841 = vmatprep.subr.bf16.mxu0 0
        %842 = vmatpush2.bf16.msra.mxu0 0
        %843 = vmatprep.subr.bf16.mxu0 0
        %844 = vmatpush2.bf16.msra.mxu0 0
        %845 = vmatprep.subr.bf16.mxu0 0
        %846 = vmatpush2.bf16.msra.mxu0 0
        %847 = vmatprep.mubr.bf16.mxu0 0
        %848 = vmatmul.mubr.bf16.gmra.mxu0 %v813
        %v849 = vpop.f32.mrf.mxu0
        %v850 = vadd.f32 %v759, %v849
        %v851 = vpop.f32.mrf.mxu0
        %v852 = vadd.f32 %v763, %v851
        %v853 = vpop.f32.mrf.mxu0
        %v854 = vadd.f32 %v759, %v853
        %v855 = vpop.f32.mrf.mxu0
        %v856 = vadd.f32 %v763, %v855
        %857 = vdwg.mxu0
        %858 = vset.pattern.permute.xlu0 0
        %859 = vperm.xlu0 %858, %v544
        %v860 = vpop.permute.xlu0 %859
        %862 = vset.pattern.permute.xlu0 0
        %863 = vperm.xlu0 %862, %v545
        %v864 = vpop.permute.xlu0 %863
        %v866 = vmul.f32 %v850, %v860
        %v867 = vmul.f32 %v852, %v860
        %v868 = vmul.f32 %v854, %v864
        %v869 = vmul.f32 %v856, %v864
        %v870 = vld [vmem:[%s5] sm:$0xf]
        %v871 = vld [vmem:[%s5 + $0x4] sm:$0xf]
        %v872 = vld [vmem:[%s5 + $0x8] sm:$0xf]
        %v873 = vld [vmem:[%s5 + $0xc] sm:$0xf]
        %v874 = vld [vmem:[%s6] sm:$0x1]
        %v876 = vlaneseq
        %v877 = vshrl.u32 %v876, 7
        %v878 = vsub.s32 0, %v877
        %v879 = vrot.slane %v874, %v878
        %v897 = vunpack.c.l.b16 %v528
        %v898 = vunpack.c.l.b16 %v529
        %v899 = vunpack.c.l.b16 %v530
        %v900 = vunpack.c.l.b16 %v531
        %v901 = vunpack.c.l.b16 %v532
        %v902 = vunpack.c.l.b16 %v533
        %v903 = vunpack.c.l.b16 %v534
        %v904 = vunpack.c.l.b16 %v535
        %v905 = vunpack.c.l.b16 %v536
        %v906 = vunpack.c.l.b16 %v537
        %v907 = vunpack.c.l.b16 %v538
        %v908 = vunpack.c.l.b16 %v539
        %v909 = vunpack.c.l.b16 %v540
        %v910 = vunpack.c.l.b16 %v541
        %v911 = vunpack.c.l.b16 %v542
        %v912 = vunpack.c.l.b16 %v543
        %v913 = vpack.c.b16 %v898, %v897
        %v914 = vpack.c.b16 %v900, %v899
        %v915 = vpack.c.b16 %v902, %v901
        %v916 = vpack.c.b16 %v904, %v903
        %v917 = vpack.c.b16 %v906, %v905
        %v918 = vpack.c.b16 %v908, %v907
        %v919 = vpack.c.b16 %v910, %v909
        %v920 = vpack.c.b16 %v912, %v911
        %v925 = vunpack.c.l.b16 %v870
        %v926 = vunpack.c.l.b16 %v871
        %v927 = vunpack.c.l.b16 %v872
        %v928 = vunpack.c.l.b16 %v873
        %v929 = vpack.c.b16 %v926, %v925
        %v930 = vpack.c.b16 %v928, %v927
        %vm933 = vcmask 261120
        %v935 = vsel %vm933, %v913, 0
        %v938 = vsel %vm933, %v914, 0
        %v941 = vsel %vm933, %v915, 0
        %v944 = vsel %vm933, %v916, 0
        %v947 = vsel %vm933, %v917, 0
        %v950 = vsel %vm933, %v918, 0
        %v953 = vsel %vm933, %v919, 0
        %v956 = vsel %vm933, %v920, 0
        %958 = vmatprep.subr.bf16.mxu0 0
        %959 = vmatpush1.bf16.msra.mxu0 0
        %960 = vmatprep.subr.bf16.mxu0 0
        %961 = vmatpush1.bf16.msra.mxu0 0
        %962 = vmatprep.subr.bf16.mxu0 0
        %963 = vmatpush1.bf16.msra.mxu0 0
        %964 = vmatprep.subr.bf16.mxu0 0
        %965 = vmatpush1.bf16.msra.mxu0 0
        %966 = vmatprep.subr.bf16.mxu0 0
        %967 = vmatpush1.bf16.msra.mxu0 0
        %968 = vmatprep.subr.bf16.mxu0 0
        %969 = vmatpush1.bf16.msra.mxu0 0
        %970 = vmatprep.subr.bf16.mxu0 0
        %971 = vmatpush1.bf16.msra.mxu0 %v930
        %972 = vmatprep.subr.bf16.mxu0 0
        %973 = vmatpush1.bf16.msra.mxu0 %v929
        %974 = vmatprep.subr.bf16.mxu0 0
        %975 = vmatpush2.bf16.msra.mxu0 0
        %976 = vmatprep.subr.bf16.mxu0 0
        %977 = vmatpush2.bf16.msra.mxu0 0
        %978 = vmatprep.subr.bf16.mxu0 0
        %979 = vmatpush2.bf16.msra.mxu0 0
        %980 = vmatprep.subr.bf16.mxu0 0
        %981 = vmatpush2.bf16.msra.mxu0 0
        %982 = vmatprep.subr.bf16.mxu0 0
        %983 = vmatpush2.bf16.msra.mxu0 0
        %984 = vmatprep.subr.bf16.mxu0 0
        %985 = vmatpush2.bf16.msra.mxu0 0
        %986 = vmatprep.subr.bf16.mxu0 0
        %987 = vmatpush2.bf16.msra.mxu0 0
        %988 = vmatprep.subr.bf16.mxu0 0
        %989 = vmatpush2.bf16.msra.mxu0 0
        %990 = vmatprep.mubr.bf16.mxu0 0
        %991 = vmatmul.mubr.bf16.gmra.mxu0 %v935
        %v992 = vpop.f32.mrf.mxu0
        %v993 = vadd.f32 %v879, %v992
        %v994 = vpop.f32.mrf.mxu0
        %v995 = vpop.f32.mrf.mxu0
        %v996 = vadd.f32 %v879, %v995
        %v997 = vpop.f32.mrf.mxu0
        %998 = vmatprep.mubr.bf16.mxu0 0
        %999 = vmatmul.mubr.bf16.gmra.mxu0 %v938
        %v1000 = vpop.f32.mrf.mxu0
        %v1001 = vadd.f32 %v879, %v1000
        %v1002 = vpop.f32.mrf.mxu0
        %v1003 = vpop.f32.mrf.mxu0
        %v1004 = vadd.f32 %v879, %v1003
        %v1005 = vpop.f32.mrf.mxu0
        %1006 = vmatprep.mubr.bf16.mxu0 0
        %1007 = vmatmul.mubr.bf16.gmra.mxu0 %v941
        %v1008 = vpop.f32.mrf.mxu0
        %v1009 = vadd.f32 %v879, %v1008
        %v1010 = vpop.f32.mrf.mxu0
        %v1011 = vpop.f32.mrf.mxu0
        %v1012 = vadd.f32 %v879, %v1011
        %v1013 = vpop.f32.mrf.mxu0
        %1014 = vmatprep.mubr.bf16.mxu0 0
        %1015 = vmatmul.mubr.bf16.gmra.mxu0 %v944
        %v1016 = vpop.f32.mrf.mxu0
        %v1017 = vadd.f32 %v879, %v1016
        %v1018 = vpop.f32.mrf.mxu0
        %v1019 = vpop.f32.mrf.mxu0
        %v1020 = vadd.f32 %v879, %v1019
        %v1021 = vpop.f32.mrf.mxu0
        %1022 = vmatprep.mubr.bf16.mxu0 0
        %1023 = vmatmul.mubr.bf16.gmra.mxu0 %v947
        %v1024 = vpop.f32.mrf.mxu0
        %v1025 = vadd.f32 %v879, %v1024
        %v1026 = vpop.f32.mrf.mxu0
        %v1027 = vpop.f32.mrf.mxu0
        %v1028 = vadd.f32 %v879, %v1027
        %v1029 = vpop.f32.mrf.mxu0
        %1030 = vmatprep.mubr.bf16.mxu0 0
        %1031 = vmatmul.mubr.bf16.gmra.mxu0 %v950
        %v1032 = vpop.f32.mrf.mxu0
        %v1033 = vadd.f32 %v879, %v1032
        %v1034 = vpop.f32.mrf.mxu0
        %v1035 = vpop.f32.mrf.mxu0
        %v1036 = vadd.f32 %v879, %v1035
        %v1037 = vpop.f32.mrf.mxu0
        %1038 = vmatprep.mubr.bf16.mxu0 0
        %1039 = vmatmul.mubr.bf16.gmra.mxu0 %v953
        %v1040 = vpop.f32.mrf.mxu0
        %v1041 = vadd.f32 %v879, %v1040
        %v1042 = vpop.f32.mrf.mxu0
        %v1043 = vpop.f32.mrf.mxu0
        %v1044 = vadd.f32 %v879, %v1043
        %v1045 = vpop.f32.mrf.mxu0
        %1046 = vmatprep.mubr.bf16.mxu0 0
        %1047 = vmatmul.mubr.bf16.gmra.mxu0 %v956
        %v1048 = vpop.f32.mrf.mxu0
        %v1049 = vadd.f32 %v879, %v1048
        %v1050 = vpop.f32.mrf.mxu0
        %v1051 = vpop.f32.mrf.mxu0
        %v1052 = vadd.f32 %v879, %v1051
        %v1053 = vpop.f32.mrf.mxu0
        %1054 = vdwg.mxu0
        %1056 = vset.pattern.permute.xlu0 0
        %1057 = vperm.xlu0 %1056, %v726
        %v1058 = vpop.permute.xlu0 %1057
        %1061 = vset.pattern.permute.xlu0 0
        %1062 = vperm.xlu0 %1061, %v727
        %v1063 = vpop.permute.xlu0 %1062
        %1066 = vset.pattern.permute.xlu0 0
        %1067 = vperm.xlu0 %1066, %v728
        %v1068 = vpop.permute.xlu0 %1067
        %1071 = vset.pattern.permute.xlu0 0
        %1072 = vperm.xlu0 %1071, %v729
        %v1073 = vpop.permute.xlu0 %1072
        %1076 = vset.pattern.permute.xlu0 0
        %1077 = vperm.xlu0 %1076, %v730
        %v1078 = vpop.permute.xlu0 %1077
        %1081 = vset.pattern.permute.xlu0 0
        %1082 = vperm.xlu0 %1081, %v731
        %v1083 = vpop.permute.xlu0 %1082
        %1086 = vset.pattern.permute.xlu0 0
        %1087 = vperm.xlu0 %1086, %v732
        %v1088 = vpop.permute.xlu0 %1087
        %1091 = vset.pattern.permute.xlu0 0
        %1092 = vperm.xlu0 %1091, %v733
        %v1093 = vpop.permute.xlu0 %1092
        %1096 = vset.pattern.permute.xlu0 0
        %1097 = vperm.xlu0 %1096, %v734
        %v1098 = vpop.permute.xlu0 %1097
        %1101 = vset.pattern.permute.xlu0 0
        %1102 = vperm.xlu0 %1101, %v735
        %v1103 = vpop.permute.xlu0 %1102
        %1106 = vset.pattern.permute.xlu0 0
        %1107 = vperm.xlu0 %1106, %v736
        %v1108 = vpop.permute.xlu0 %1107
        %1111 = vset.pattern.permute.xlu0 0
        %1112 = vperm.xlu0 %1111, %v737
        %v1113 = vpop.permute.xlu0 %1112
        %1116 = vset.pattern.permute.xlu0 0
        %1117 = vperm.xlu0 %1116, %v738
        %v1118 = vpop.permute.xlu0 %1117
        %1121 = vset.pattern.permute.xlu0 0
        %1122 = vperm.xlu0 %1121, %v739
        %v1123 = vpop.permute.xlu0 %1122
        %1126 = vset.pattern.permute.xlu0 0
        %1127 = vperm.xlu0 %1126, %v740
        %v1128 = vpop.permute.xlu0 %1127
        %1131 = vset.pattern.permute.xlu0 0
        %1132 = vperm.xlu0 %1131, %v741
        %v1133 = vpop.permute.xlu0 %1132
        %v1135 = vmul.f32 %v993, %v1058
        %v1136 = vmul.f32 %v996, %v1063
        %v1137 = vmul.f32 %v1001, %v1068
        %v1138 = vmul.f32 %v1004, %v1073
        %v1139 = vmul.f32 %v1009, %v1078
        %v1140 = vmul.f32 %v1012, %v1083
        %v1141 = vmul.f32 %v1017, %v1088
        %v1142 = vmul.f32 %v1020, %v1093
        %v1143 = vmul.f32 %v1025, %v1098
        %v1144 = vmul.f32 %v1028, %v1103
        %v1145 = vmul.f32 %v1033, %v1108
        %v1146 = vmul.f32 %v1036, %v1113
        %v1147 = vmul.f32 %v1041, %v1118
        %v1148 = vmul.f32 %v1044, %v1123
        %v1149 = vmul.f32 %v1049, %v1128
        %v1150 = vmul.f32 %v1052, %v1133
        %v1153 = vcombine.high %v866, %v866
        %v1155 = vunpack.c.l.s4 1966171168
        %v1156 = vunpack.c.0.s8 %v1155
        %v1157 = vlaneseq
        %v1158 = vshrl.u32 %v1157, 7
        %v1159 = vsub.s32 %v1156, %v1158
        %v1160 = vrot.slane %v866, %v1159
        %v1162 = vunpack.c.l.s4 1966171168
        %v1163 = vunpack.c.0.s8 %v1162
        %v1164 = vlaneseq
        %v1165 = vshrl.u32 %v1164, 7
        %v1166 = vsub.s32 %v1163, %v1165
        %v1167 = vrot.slane %v1153, %v1166
        %v1168 = vcombine.high %v1160, %v1160
        %v1169 = vcombine.high %v1167, %v1167
        %v1171 = vunpack.c.l.s4 1966171168
        %v1172 = vunpack.c.0.s8 %v1171
        %v1173 = vlaneseq
        %v1174 = vshrl.u32 %v1173, 7
        %v1175 = vsub.s32 %v1172, %v1174
        %v1176 = vrot.slane %v1160, %v1175
        %v1178 = vunpack.c.l.s4 1966171168
        %v1179 = vunpack.c.0.s8 %v1178
        %v1180 = vlaneseq
        %v1181 = vshrl.u32 %v1180, 7
        %v1182 = vsub.s32 %v1179, %v1181
        %v1183 = vrot.slane %v1167, %v1182
        %v1185 = vunpack.c.l.s4 1966171168
        %v1186 = vunpack.c.0.s8 %v1185
        %v1187 = vlaneseq
        %v1188 = vshrl.u32 %v1187, 7
        %v1189 = vsub.s32 %v1186, %v1188
        %v1190 = vrot.slane %v1168, %v1189
        %v1192 = vunpack.c.l.s4 1966171168
        %v1193 = vunpack.c.0.s8 %v1192
        %v1194 = vlaneseq
        %v1195 = vshrl.u32 %v1194, 7
        %v1196 = vsub.s32 %v1193, %v1195
        %v1197 = vrot.slane %v1169, %v1196
        %v1198 = vcombine.high %v1176, %v1176
        %v1199 = vcombine.high %v1183, %v1183
        %v1200 = vcombine.high %v1190, %v1190
        %v1201 = vcombine.high %v1197, %v1197
        %v1202 = vcombine.high %v868, %v868
        %v1204 = vunpack.c.l.s4 1966171168
        %v1205 = vunpack.c.0.s8 %v1204
        %v1206 = vlaneseq
        %v1207 = vshrl.u32 %v1206, 7
        %v1208 = vsub.s32 %v1205, %v1207
        %v1209 = vrot.slane %v868, %v1208
        %v1211 = vunpack.c.l.s4 1966171168
        %v1212 = vunpack.c.0.s8 %v1211
        %v1213 = vlaneseq
        %v1214 = vshrl.u32 %v1213, 7
        %v1215 = vsub.s32 %v1212, %v1214
        %v1216 = vrot.slane %v1202, %v1215
        %v1217 = vcombine.high %v1209, %v1209
        %v1218 = vcombine.high %v1216, %v1216
        %v1220 = vunpack.c.l.s4 1966171168
        %v1221 = vunpack.c.0.s8 %v1220
        %v1222 = vlaneseq
        %v1223 = vshrl.u32 %v1222, 7
        %v1224 = vsub.s32 %v1221, %v1223
        %v1225 = vrot.slane %v1209, %v1224
        %v1227 = vunpack.c.l.s4 1966171168
        %v1228 = vunpack.c.0.s8 %v1227
        %v1229 = vlaneseq
        %v1230 = vshrl.u32 %v1229, 7
        %v1231 = vsub.s32 %v1228, %v1230
        %v1232 = vrot.slane %v1216, %v1231
        %v1234 = vunpack.c.l.s4 1966171168
        %v1235 = vunpack.c.0.s8 %v1234
        %v1236 = vlaneseq
        %v1237 = vshrl.u32 %v1236, 7
        %v1238 = vsub.s32 %v1235, %v1237
        %v1239 = vrot.slane %v1217, %v1238
        %v1241 = vunpack.c.l.s4 1966171168
        %v1242 = vunpack.c.0.s8 %v1241
        %v1243 = vlaneseq
        %v1244 = vshrl.u32 %v1243, 7
        %v1245 = vsub.s32 %v1242, %v1244
        %v1246 = vrot.slane %v1218, %v1245
        %v1247 = vcombine.high %v1225, %v1225
        %v1248 = vcombine.high %v1232, %v1232
        %v1249 = vcombine.high %v1239, %v1239
        %v1250 = vcombine.high %v1246, %v1246
        %v1251 = vlaneseq
        %v1252 = vshrl.u32 %v1251, 7
        %v1253 = vsub.s32 0, %v1252
        %v1254 = vrot.slane %v1176, %v1253
        %v1255 = vlaneseq
        %v1256 = vshrl.u32 %v1255, 7
        %v1257 = vsub.s32 0, %v1256
        %v1258 = vrot.slane %v1190, %v1257
        %v1259 = vlaneseq
        %v1260 = vshrl.u32 %v1259, 7
        %v1261 = vsub.s32 0, %v1260
        %v1262 = vrot.slane %v1198, %v1261
        %v1263 = vlaneseq
        %v1264 = vshrl.u32 %v1263, 7
        %v1265 = vsub.s32 0, %v1264
        %v1266 = vrot.slane %v1200, %v1265
        %v1267 = vlaneseq
        %v1268 = vshrl.u32 %v1267, 7
        %v1269 = vsub.s32 0, %v1268
        %v1270 = vrot.slane %v1183, %v1269
        %v1271 = vlaneseq
        %v1272 = vshrl.u32 %v1271, 7
        %v1273 = vsub.s32 0, %v1272
        %v1274 = vrot.slane %v1197, %v1273
        %v1275 = vlaneseq
        %v1276 = vshrl.u32 %v1275, 7
        %v1277 = vsub.s32 0, %v1276
        %v1278 = vrot.slane %v1199, %v1277
        %v1279 = vlaneseq
        %v1280 = vshrl.u32 %v1279, 7
        %v1281 = vsub.s32 0, %v1280
        %v1282 = vrot.slane %v1201, %v1281
        %v1283 = vlaneseq
        %v1284 = vshrl.u32 %v1283, 7
        %v1285 = vsub.s32 0, %v1284
        %v1286 = vrot.slane %v1225, %v1285
        %v1287 = vlaneseq
        %v1288 = vshrl.u32 %v1287, 7
        %v1289 = vsub.s32 0, %v1288
        %v1290 = vrot.slane %v1239, %v1289
        %v1291 = vlaneseq
        %v1292 = vshrl.u32 %v1291, 7
        %v1293 = vsub.s32 0, %v1292
        %v1294 = vrot.slane %v1247, %v1293
        %v1295 = vlaneseq
        %v1296 = vshrl.u32 %v1295, 7
        %v1297 = vsub.s32 0, %v1296
        %v1298 = vrot.slane %v1249, %v1297
        %v1299 = vlaneseq
        %v1300 = vshrl.u32 %v1299, 7
        %v1301 = vsub.s32 0, %v1300
        %v1302 = vrot.slane %v1232, %v1301
        %v1303 = vlaneseq
        %v1304 = vshrl.u32 %v1303, 7
        %v1305 = vsub.s32 0, %v1304
        %v1306 = vrot.slane %v1246, %v1305
        %v1307 = vlaneseq
        %v1308 = vshrl.u32 %v1307, 7
        %v1309 = vsub.s32 0, %v1308
        %v1310 = vrot.slane %v1248, %v1309
        %v1311 = vlaneseq
        %v1312 = vshrl.u32 %v1311, 7
        %v1313 = vsub.s32 0, %v1312
        %v1314 = vrot.slane %v1250, %v1313
        %1331 = vrot.lane.b32.xlu0 %v866, 64
        %v1332 = vpop.permute.xlu0 %1331
        %1333 = vrot.lane.b32.xlu0 %v868, 64
        %v1334 = vpop.permute.xlu0 %1333
        %v1337 = vmul.f32 %v1254, %v1332
        %v1338 = vmul.f32 %v1258, %v1332
        %v1339 = vmul.f32 %v1262, %v1332
        %v1340 = vmul.f32 %v1266, %v1332
        %v1341 = vmul.f32 %v1270, %v1332
        %v1342 = vmul.f32 %v1274, %v1332
        %v1343 = vmul.f32 %v1278, %v1332
        %v1344 = vmul.f32 %v1282, %v1332
        %v1345 = vmul.f32 %v1286, %v1334
        %v1346 = vmul.f32 %v1290, %v1334
        %v1347 = vmul.f32 %v1294, %v1334
        %v1348 = vmul.f32 %v1298, %v1334
        %v1349 = vmul.f32 %v1302, %v1334
        %v1350 = vmul.f32 %v1306, %v1334
        %v1351 = vmul.f32 %v1310, %v1334
        %v1352 = vmul.f32 %v1314, %v1334
        %v1353 = vmul.f32 %v1337, 0.25
        %v1354 = vmul.f32 %v1338, 0.25
        %v1355 = vmul.f32 %v1339, 0.25
        %v1356 = vmul.f32 %v1340, 0.25
        %v1357 = vmul.f32 %v1341, 0.25
        %v1358 = vmul.f32 %v1342, 0.25
        %v1359 = vmul.f32 %v1343, 0.25
        %v1360 = vmul.f32 %v1344, 0.25
        %v1361 = vmul.f32 %v1345, 0.25
        %v1362 = vmul.f32 %v1346, 0.25
        %v1363 = vmul.f32 %v1347, 0.25
        %v1364 = vmul.f32 %v1348, 0.25
        %v1365 = vmul.f32 %v1349, 0.25
        %v1366 = vmul.f32 %v1350, 0.25
        %v1367 = vmul.f32 %v1351, 0.25
        %v1368 = vmul.f32 %v1352, 0.25
        %v1369 = vadd.f32 %v1135, 1.0
        %v1370 = vadd.f32 %v1136, 1.0
        %v1371 = vadd.f32 %v1137, 1.0
        %v1372 = vadd.f32 %v1138, 1.0
        %v1373 = vadd.f32 %v1139, 1.0
        %v1374 = vadd.f32 %v1140, 1.0
        %v1375 = vadd.f32 %v1141, 1.0
        %v1376 = vadd.f32 %v1142, 1.0
        %v1377 = vadd.f32 %v1143, 1.0
        %v1378 = vadd.f32 %v1144, 1.0
        %v1379 = vadd.f32 %v1145, 1.0
        %v1380 = vadd.f32 %v1146, 1.0
        %v1381 = vadd.f32 %v1147, 1.0
        %v1382 = vadd.f32 %v1148, 1.0
        %v1383 = vadd.f32 %v1149, 1.0
        %v1384 = vadd.f32 %v1150, 1.0
        %v1385 = vmul.f32 %v1353, %v1369
        %v1386 = vmul.f32 %v1354, %v1370
        %v1387 = vmul.f32 %v1355, %v1371
        %v1388 = vmul.f32 %v1356, %v1372
        %v1389 = vmul.f32 %v1357, %v1373
        %v1390 = vmul.f32 %v1358, %v1374
        %v1391 = vmul.f32 %v1359, %v1375
        %v1392 = vmul.f32 %v1360, %v1376
        %v1393 = vmul.f32 %v1361, %v1377
        %v1394 = vmul.f32 %v1362, %v1378
        %v1395 = vmul.f32 %v1363, %v1379
        %v1396 = vmul.f32 %v1364, %v1380
        %v1397 = vmul.f32 %v1365, %v1381
        %v1398 = vmul.f32 %v1366, %v1382
        %v1399 = vmul.f32 %v1367, %v1383
        %v1400 = vmul.f32 %v1368, %v1384
        %1417 = vrot.lane.b32.xlu0 %v1135, 64
        %v1418 = vpop.permute.xlu0 %1417
        %1419 = vrot.lane.b32.xlu0 %v1136, 64
        %v1420 = vpop.permute.xlu0 %1419
        %1421 = vrot.lane.b32.xlu0 %v1137, 64
        %v1422 = vpop.permute.xlu0 %1421
        %1423 = vrot.lane.b32.xlu0 %v1138, 64
        %v1424 = vpop.permute.xlu0 %1423
        %1425 = vrot.lane.b32.xlu0 %v1139, 64
        %v1426 = vpop.permute.xlu0 %1425
        %1427 = vrot.lane.b32.xlu0 %v1140, 64
        %v1428 = vpop.permute.xlu0 %1427
        %1429 = vrot.lane.b32.xlu0 %v1141, 64
        %v1430 = vpop.permute.xlu0 %1429
        %1431 = vrot.lane.b32.xlu0 %v1142, 64
        %v1432 = vpop.permute.xlu0 %1431
        %1433 = vrot.lane.b32.xlu0 %v1143, 64
        %v1434 = vpop.permute.xlu0 %1433
        %1435 = vrot.lane.b32.xlu0 %v1144, 64
        %v1436 = vpop.permute.xlu0 %1435
        %1437 = vrot.lane.b32.xlu0 %v1145, 64
        %v1438 = vpop.permute.xlu0 %1437
        %1439 = vrot.lane.b32.xlu0 %v1146, 64
        %v1440 = vpop.permute.xlu0 %1439
        %1441 = vrot.lane.b32.xlu0 %v1147, 64
        %v1442 = vpop.permute.xlu0 %1441
        %1443 = vrot.lane.b32.xlu0 %v1148, 64
        %v1444 = vpop.permute.xlu0 %1443
        %1445 = vrot.lane.b32.xlu0 %v1149, 64
        %v1446 = vpop.permute.xlu0 %1445
        %1447 = vrot.lane.b32.xlu0 %v1150, 64
        %v1448 = vpop.permute.xlu0 %1447
        %v1465 = vadd.f32 %v1385, %v1418
        %v1466 = vadd.f32 %v1386, %v1420
        %v1467 = vadd.f32 %v1387, %v1422
        %v1468 = vadd.f32 %v1388, %v1424
        %v1469 = vadd.f32 %v1389, %v1426
        %v1470 = vadd.f32 %v1390, %v1428
        %v1471 = vadd.f32 %v1391, %v1430
        %v1472 = vadd.f32 %v1392, %v1432
        %v1473 = vadd.f32 %v1393, %v1434
        %v1474 = vadd.f32 %v1394, %v1436
        %v1475 = vadd.f32 %v1395, %v1438
        %v1476 = vadd.f32 %v1396, %v1440
        %v1477 = vadd.f32 %v1397, %v1442
        %v1478 = vadd.f32 %v1398, %v1444
        %v1479 = vadd.f32 %v1399, %v1446
        %v1480 = vadd.f32 %v1400, %v1448
        %v1481 = vpack.c.bf16 %v1466, %v1465
        %v1482 = vpack.c.bf16 %v1468, %v1467
        %v1483 = vpack.c.bf16 %v1470, %v1469
        %v1484 = vpack.c.bf16 %v1472, %v1471
        %v1485 = vpack.c.bf16 %v1474, %v1473
        %v1486 = vpack.c.bf16 %v1476, %v1475
        %v1487 = vpack.c.bf16 %v1478, %v1477
        %v1488 = vpack.c.bf16 %v1480, %v1479
        %v1489 = vld [vmem:[%s7] sm:$0xf]
        %v1490 = vld [vmem:[%s7 + $0x4] sm:$0xf]
        %v1491 = vld [vmem:[%s7 + $0x8] sm:$0xf]
        %v1492 = vld [vmem:[%s7 + $0xc] sm:$0xf]
        %v1493 = vld [vmem:[%s7 + $0x10] sm:$0xf]
        %v1494 = vld [vmem:[%s7 + $0x14] sm:$0xf]
        %v1495 = vld [vmem:[%s7 + $0x18] sm:$0xf]
        %v1496 = vld [vmem:[%s7 + $0x1c] sm:$0xf]
        %v1497 = vld [vmem:[%s8] sm:$0x1]
        %v1499 = vlaneseq
        %v1500 = vshrl.u32 %v1499, 7
        %v1501 = vsub.s32 0, %v1500
        %v1502 = vrot.slane %v1497, %v1501
        %v1512 = vunpack.c.l.b16 %v1489
        %v1513 = vunpack.c.l.b16 %v1490
        %v1514 = vunpack.c.l.b16 %v1491
        %v1515 = vunpack.c.l.b16 %v1492
        %v1516 = vunpack.c.l.b16 %v1493
        %v1517 = vunpack.c.l.b16 %v1494
        %v1518 = vunpack.c.l.b16 %v1495
        %v1519 = vunpack.c.l.b16 %v1496
        %v1520 = vpack.c.b16 %v1513, %v1512
        %v1521 = vpack.c.b16 %v1515, %v1514
        %v1522 = vpack.c.b16 %v1517, %v1516
        %v1523 = vpack.c.b16 %v1519, %v1518
        %v1529 = vsel %vm811, %v1481, 0
        %v1532 = vsel %vm811, %v1482, 0
        %v1535 = vsel %vm811, %v1483, 0
        %v1538 = vsel %vm811, %v1484, 0
        %v1541 = vsel %vm811, %v1485, 0
        %v1544 = vsel %vm811, %v1486, 0
        %v1547 = vsel %vm811, %v1487, 0
        %v1550 = vsel %vm811, %v1488, 0
        %1552 = vmatprep.subr.bf16.mxu0 0
        %1553 = vmatpush1.bf16.msra.mxu0 0
        %1554 = vmatprep.subr.bf16.mxu0 0
        %1555 = vmatpush1.bf16.msra.mxu0 0
        %1556 = vmatprep.subr.bf16.mxu0 0
        %1557 = vmatpush1.bf16.msra.mxu0 0
        %1558 = vmatprep.subr.bf16.mxu0 0
        %1559 = vmatpush1.bf16.msra.mxu0 0
        %1560 = vmatprep.subr.bf16.mxu0 0
        %1561 = vmatpush1.bf16.msra.mxu0 %v1523
        %1562 = vmatprep.subr.bf16.mxu0 0
        %1563 = vmatpush1.bf16.msra.mxu0 %v1522
        %1564 = vmatprep.subr.bf16.mxu0 0
        %1565 = vmatpush1.bf16.msra.mxu0 %v1521
        %1566 = vmatprep.subr.bf16.mxu0 0
        %1567 = vmatpush1.bf16.msra.mxu0 %v1520
        %1568 = vmatprep.subr.bf16.mxu0 0
        %1569 = vmatpush2.bf16.msra.mxu0 0
        %1570 = vmatprep.subr.bf16.mxu0 0
        %1571 = vmatpush2.bf16.msra.mxu0 0
        %1572 = vmatprep.subr.bf16.mxu0 0
        %1573 = vmatpush2.bf16.msra.mxu0 0
        %1574 = vmatprep.subr.bf16.mxu0 0
        %1575 = vmatpush2.bf16.msra.mxu0 0
        %1576 = vmatprep.subr.bf16.mxu0 0
        %1577 = vmatpush2.bf16.msra.mxu0 0
        %1578 = vmatprep.subr.bf16.mxu0 0
        %1579 = vmatpush2.bf16.msra.mxu0 0
        %1580 = vmatprep.subr.bf16.mxu0 0
        %1581 = vmatpush2.bf16.msra.mxu0 0
        %1582 = vmatprep.subr.bf16.mxu0 0
        %1583 = vmatpush2.bf16.msra.mxu0 0
        %1584 = vmatprep.mubr.bf16.mxu0 0
        %1585 = vmatmul.mubr.bf16.gmra.mxu0 %v1529
        %v1586 = vpop.f32.mrf.mxu0
        %v1587 = vadd.f32 %v1502, %v1586
        %v1588 = vpop.f32.mrf.mxu0
        %v1589 = vpop.f32.mrf.mxu0
        %v1590 = vadd.f32 %v1502, %v1589
        %v1591 = vpop.f32.mrf.mxu0
        %1592 = vmatprep.mubr.bf16.mxu0 0
        %1593 = vmatmul.mubr.bf16.gmra.mxu0 %v1532
        %v1594 = vpop.f32.mrf.mxu0
        %v1595 = vadd.f32 %v1502, %v1594
        %v1596 = vpop.f32.mrf.mxu0
        %v1597 = vpop.f32.mrf.mxu0
        %v1598 = vadd.f32 %v1502, %v1597
        %v1599 = vpop.f32.mrf.mxu0
        %1600 = vmatprep.mubr.bf16.mxu0 0
        %1601 = vmatmul.mubr.bf16.gmra.mxu0 %v1535
        %v1602 = vpop.f32.mrf.mxu0
        %v1603 = vadd.f32 %v1502, %v1602
        %v1604 = vpop.f32.mrf.mxu0
        %v1605 = vpop.f32.mrf.mxu0
        %v1606 = vadd.f32 %v1502, %v1605
        %v1607 = vpop.f32.mrf.mxu0
        %1608 = vmatprep.mubr.bf16.mxu0 0
        %1609 = vmatmul.mubr.bf16.gmra.mxu0 %v1538
        %v1610 = vpop.f32.mrf.mxu0
        %v1611 = vadd.f32 %v1502, %v1610
        %v1612 = vpop.f32.mrf.mxu0
        %v1613 = vpop.f32.mrf.mxu0
        %v1614 = vadd.f32 %v1502, %v1613
        %v1615 = vpop.f32.mrf.mxu0
        %1616 = vmatprep.mubr.bf16.mxu0 0
        %1617 = vmatmul.mubr.bf16.gmra.mxu0 %v1541
        %v1618 = vpop.f32.mrf.mxu0
        %v1619 = vadd.f32 %v1502, %v1618
        %v1620 = vpop.f32.mrf.mxu0
        %v1621 = vpop.f32.mrf.mxu0
        %v1622 = vadd.f32 %v1502, %v1621
        %v1623 = vpop.f32.mrf.mxu0
        %1624 = vmatprep.mubr.bf16.mxu0 0
        %1625 = vmatmul.mubr.bf16.gmra.mxu0 %v1544
        %v1626 = vpop.f32.mrf.mxu0
        %v1627 = vadd.f32 %v1502, %v1626
        %v1628 = vpop.f32.mrf.mxu0
        %v1629 = vpop.f32.mrf.mxu0
        %v1630 = vadd.f32 %v1502, %v1629
        %v1631 = vpop.f32.mrf.mxu0
        %1632 = vmatprep.mubr.bf16.mxu0 0
        %1633 = vmatmul.mubr.bf16.gmra.mxu0 %v1547
        %v1634 = vpop.f32.mrf.mxu0
        %v1635 = vadd.f32 %v1502, %v1634
        %v1636 = vpop.f32.mrf.mxu0
        %v1637 = vpop.f32.mrf.mxu0
        %v1638 = vadd.f32 %v1502, %v1637
        %v1639 = vpop.f32.mrf.mxu0
        %1640 = vmatprep.mubr.bf16.mxu0 0
        %1641 = vmatmul.mubr.bf16.gmra.mxu0 %v1550
        %v1642 = vpop.f32.mrf.mxu0
        %v1643 = vadd.f32 %v1502, %v1642
        %v1644 = vpop.f32.mrf.mxu0
        %v1645 = vpop.f32.mrf.mxu0
        %v1646 = vadd.f32 %v1502, %v1645
        %v1647 = vpop.f32.mrf.mxu0
        %1648 = vdwg.mxu0
        %v1649 = vmul.f32 %v1587, %v1058
        %v1650 = vmul.f32 %v1590, %v1063
        %v1651 = vmul.f32 %v1595, %v1068
        %v1652 = vmul.f32 %v1598, %v1073
        %v1653 = vmul.f32 %v1603, %v1078
        %v1654 = vmul.f32 %v1606, %v1083
        %v1655 = vmul.f32 %v1611, %v1088
        %v1656 = vmul.f32 %v1614, %v1093
        %v1657 = vmul.f32 %v1619, %v1098
        %v1658 = vmul.f32 %v1622, %v1103
        %v1659 = vmul.f32 %v1627, %v1108
        %v1660 = vmul.f32 %v1630, %v1113
        %v1661 = vmul.f32 %v1635, %v1118
        %v1662 = vmul.f32 %v1638, %v1123
        %v1663 = vmul.f32 %v1643, %v1128
        %v1664 = vmul.f32 %v1646, %v1133
        %v1681 = vrot.slane %v1650, 7
        %vm1682 = vcmask 1041409
        %v1683 = vsel %vm1682, %v1681, %v1649
        %v1684 = vrot.slane %v1651, 6
        %vm1685 = vcmask 1042434
        %v1686 = vsel %vm1685, %v1684, %v1683
        %v1687 = vrot.slane %v1652, 5
        %vm1688 = vcmask 1043459
        %v1689 = vsel %vm1688, %v1687, %v1686
        %v1690 = vrot.slane %v1653, 4
        %vm1691 = vcmask 1044484
        %v1692 = vsel %vm1691, %v1690, %v1689
        %v1693 = vrot.slane %v1654, 3
        %vm1694 = vcmask 1045509
        %v1695 = vsel %vm1694, %v1693, %v1692
        %v1696 = vrot.slane %v1655, 2
        %vm1697 = vcmask 1046534
        %v1698 = vsel %vm1697, %v1696, %v1695
        %v1699 = vrot.slane %v1656, 1
        %vm1700 = vcmask 1047559
        %v1701 = vsel %vm1700, %v1699, %v1698
        %v1702 = vrot.slane %v1658, 7
        %v1703 = vsel %vm1682, %v1702, %v1657
        %v1704 = vrot.slane %v1659, 6
        %v1705 = vsel %vm1685, %v1704, %v1703
        %v1706 = vrot.slane %v1660, 5
        %v1707 = vsel %vm1688, %v1706, %v1705
        %v1708 = vrot.slane %v1661, 4
        %v1709 = vsel %vm1691, %v1708, %v1707
        %v1710 = vrot.slane %v1662, 3
        %v1711 = vsel %vm1694, %v1710, %v1709
        %v1712 = vrot.slane %v1663, 2
        %v1713 = vsel %vm1697, %v1712, %v1711
        %v1714 = vrot.slane %v1664, 1
        %v1715 = vsel %vm1700, %v1714, %v1713
        %v1718 = vrot.slane %v1649, 1
        %v1719 = vsel %vm1682, %v1650, %v1718
        %v1720 = vrot.slane %v1651, 7
        %v1721 = vsel %vm1685, %v1720, %v1719
        %v1722 = vrot.slane %v1652, 6
        %v1723 = vsel %vm1688, %v1722, %v1721
        %v1724 = vrot.slane %v1653, 5
        %v1725 = vsel %vm1691, %v1724, %v1723
        %v1726 = vrot.slane %v1654, 4
        %v1727 = vsel %vm1694, %v1726, %v1725
        %v1728 = vrot.slane %v1655, 3
        %v1729 = vsel %vm1697, %v1728, %v1727
        %v1730 = vrot.slane %v1656, 2
        %v1731 = vsel %vm1700, %v1730, %v1729
        %v1732 = vrot.slane %v1657, 1
        %v1733 = vsel %vm1682, %v1658, %v1732
        %v1734 = vrot.slane %v1659, 7
        %v1735 = vsel %vm1685, %v1734, %v1733
        %v1736 = vrot.slane %v1660, 6
        %v1737 = vsel %vm1688, %v1736, %v1735
        %v1738 = vrot.slane %v1661, 5
        %v1739 = vsel %vm1691, %v1738, %v1737
        %v1740 = vrot.slane %v1662, 4
        %v1741 = vsel %vm1694, %v1740, %v1739
        %v1742 = vrot.slane %v1663, 3
        %v1743 = vsel %vm1697, %v1742, %v1741
        %v1744 = vrot.slane %v1664, 2
        %v1745 = vsel %vm1700, %v1744, %v1743
        %1746 = vrot.lane.b32.xlu0 %v1731, 32
        %v1747 = vpop.permute.xlu0 %1746
        %1748 = vrot.lane.b32.xlu0 %v1745, 32
        %v1749 = vpop.permute.xlu0 %1748
        %v1752 = vrot.slane %v1649, 2
        %v1753 = vrot.slane %v1650, 1
        %v1754 = vsel %vm1682, %v1753, %v1752
        %v1755 = vsel %vm1685, %v1651, %v1754
        %v1756 = vrot.slane %v1652, 7
        %v1757 = vsel %vm1688, %v1756, %v1755
        %v1758 = vrot.slane %v1653, 6
        %v1759 = vsel %vm1691, %v1758, %v1757
        %v1760 = vrot.slane %v1654, 5
        %v1761 = vsel %vm1694, %v1760, %v1759
        %v1762 = vrot.slane %v1655, 4
        %v1763 = vsel %vm1697, %v1762, %v1761
        %v1764 = vrot.slane %v1656, 3
        %v1765 = vsel %vm1700, %v1764, %v1763
        %v1766 = vrot.slane %v1657, 2
        %v1767 = vrot.slane %v1658, 1
        %v1768 = vsel %vm1682, %v1767, %v1766
        %v1769 = vsel %vm1685, %v1659, %v1768
        %v1770 = vrot.slane %v1660, 7
        %v1771 = vsel %vm1688, %v1770, %v1769
        %v1772 = vrot.slane %v1661, 6
        %v1773 = vsel %vm1691, %v1772, %v1771
        %v1774 = vrot.slane %v1662, 5
        %v1775 = vsel %vm1694, %v1774, %v1773
        %v1776 = vrot.slane %v1663, 4
        %v1777 = vsel %vm1697, %v1776, %v1775
        %v1778 = vrot.slane %v1664, 3
        %v1779 = vsel %vm1700, %v1778, %v1777
        %1780 = vrot.lane.b32.xlu0 %v1765, 64
        %v1781 = vpop.permute.xlu0 %1780
        %1782 = vrot.lane.b32.xlu0 %v1779, 64
        %v1783 = vpop.permute.xlu0 %1782
        %v1786 = vrot.slane %v1649, 3
        %v1787 = vrot.slane %v1650, 2
        %v1788 = vsel %vm1682, %v1787, %v1786
        %v1789 = vrot.slane %v1651, 1
        %v1790 = vsel %vm1685, %v1789, %v1788
        %v1791 = vsel %vm1688, %v1652, %v1790
        %v1792 = vrot.slane %v1653, 7
        %v1793 = vsel %vm1691, %v1792, %v1791
        %v1794 = vrot.slane %v1654, 6
        %v1795 = vsel %vm1694, %v1794, %v1793
        %v1796 = vrot.slane %v1655, 5
        %v1797 = vsel %vm1697, %v1796, %v1795
        %v1798 = vrot.slane %v1656, 4
        %v1799 = vsel %vm1700, %v1798, %v1797
        %v1800 = vrot.slane %v1657, 3
        %v1801 = vrot.slane %v1658, 2
        %v1802 = vsel %vm1682, %v1801, %v1800
        %v1803 = vrot.slane %v1659, 1
        %v1804 = vsel %vm1685, %v1803, %v1802
        %v1805 = vsel %vm1688, %v1660, %v1804
        %v1806 = vrot.slane %v1661, 7
        %v1807 = vsel %vm1691, %v1806, %v1805
        %v1808 = vrot.slane %v1662, 6
        %v1809 = vsel %vm1694, %v1808, %v1807
        %v1810 = vrot.slane %v1663, 5
        %v1811 = vsel %vm1697, %v1810, %v1809
        %v1812 = vrot.slane %v1664, 4
        %v1813 = vsel %vm1700, %v1812, %v1811
        %1814 = vrot.lane.b32.xlu0 %v1799, 96
        %v1815 = vpop.permute.xlu0 %1814
        %1816 = vrot.lane.b32.xlu0 %v1813, 96
        %v1817 = vpop.permute.xlu0 %1816
        %v1820 = vrot.slane %v1649, 4
        %v1821 = vrot.slane %v1650, 3
        %v1822 = vsel %vm1682, %v1821, %v1820
        %v1823 = vrot.slane %v1651, 2
        %v1824 = vsel %vm1685, %v1823, %v1822
        %v1825 = vrot.slane %v1652, 1
        %v1826 = vsel %vm1688, %v1825, %v1824
        %v1827 = vsel %vm1691, %v1653, %v1826
        %v1828 = vrot.slane %v1654, 7
        %v1829 = vsel %vm1694, %v1828, %v1827
        %v1830 = vrot.slane %v1655, 6
        %v1831 = vsel %vm1697, %v1830, %v1829
        %v1832 = vrot.slane %v1656, 5
        %v1833 = vsel %vm1700, %v1832, %v1831
        %v1834 = vrot.slane %v1657, 4
        %v1835 = vrot.slane %v1658, 3
        %v1836 = vsel %vm1682, %v1835, %v1834
        %v1837 = vrot.slane %v1659, 2
        %v1838 = vsel %vm1685, %v1837, %v1836
        %v1839 = vrot.slane %v1660, 1
        %v1840 = vsel %vm1688, %v1839, %v1838
        %v1841 = vsel %vm1691, %v1661, %v1840
        %v1842 = vrot.slane %v1662, 7
        %v1843 = vsel %vm1694, %v1842, %v1841
        %v1844 = vrot.slane %v1663, 6
        %v1845 = vsel %vm1697, %v1844, %v1843
        %v1846 = vrot.slane %v1664, 5
        %v1847 = vsel %vm1700, %v1846, %v1845
        %v1850 = vrot.slane %v1649, 5
        %v1851 = vrot.slane %v1650, 4
        %v1852 = vsel %vm1682, %v1851, %v1850
        %v1853 = vrot.slane %v1651, 3
        %v1854 = vsel %vm1685, %v1853, %v1852
        %v1855 = vrot.slane %v1652, 2
        %v1856 = vsel %vm1688, %v1855, %v1854
        %v1857 = vrot.slane %v1653, 1
        %v1858 = vsel %vm1691, %v1857, %v1856
        %v1859 = vsel %vm1694, %v1654, %v1858
        %v1860 = vrot.slane %v1655, 7
        %v1861 = vsel %vm1697, %v1860, %v1859
        %v1862 = vrot.slane %v1656, 6
        %v1863 = vsel %vm1700, %v1862, %v1861
        %v1864 = vrot.slane %v1657, 5
        %v1865 = vrot.slane %v1658, 4
        %v1866 = vsel %vm1682, %v1865, %v1864
        %v1867 = vrot.slane %v1659, 3
        %v1868 = vsel %vm1685, %v1867, %v1866
        %v1869 = vrot.slane %v1660, 2
        %v1870 = vsel %vm1688, %v1869, %v1868
        %v1871 = vrot.slane %v1661, 1
        %v1872 = vsel %vm1691, %v1871, %v1870
        %v1873 = vsel %vm1694, %v1662, %v1872
        %v1874 = vrot.slane %v1663, 7
        %v1875 = vsel %vm1697, %v1874, %v1873
        %v1876 = vrot.slane %v1664, 6
        %v1877 = vsel %vm1700, %v1876, %v1875
        %1878 = vrot.lane.b32.xlu0 %v1863, 32
        %v1879 = vpop.permute.xlu0 %1878
        %1880 = vrot.lane.b32.xlu0 %v1877, 32
        %v1881 = vpop.permute.xlu0 %1880
        %v1884 = vrot.slane %v1649, 6
        %v1885 = vrot.slane %v1650, 5
        %v1886 = vsel %vm1682, %v1885, %v1884
        %v1887 = vrot.slane %v1651, 4
        %v1888 = vsel %vm1685, %v1887, %v1886
        %v1889 = vrot.slane %v1652, 3
        %v1890 = vsel %vm1688, %v1889, %v1888
        %v1891 = vrot.slane %v1653, 2
        %v1892 = vsel %vm1691, %v1891, %v1890
        %v1893 = vrot.slane %v1654, 1
        %v1894 = vsel %vm1694, %v1893, %v1892
        %v1895 = vsel %vm1697, %v1655, %v1894
        %v1896 = vrot.slane %v1656, 7
        %v1897 = vsel %vm1700, %v1896, %v1895
        %v1898 = vrot.slane %v1657, 6
        %v1899 = vrot.slane %v1658, 5
        %v1900 = vsel %vm1682, %v1899, %v1898
        %v1901 = vrot.slane %v1659, 4
        %v1902 = vsel %vm1685, %v1901, %v1900
        %v1903 = vrot.slane %v1660, 3
        %v1904 = vsel %vm1688, %v1903, %v1902
        %v1905 = vrot.slane %v1661, 2
        %v1906 = vsel %vm1691, %v1905, %v1904
        %v1907 = vrot.slane %v1662, 1
        %v1908 = vsel %vm1694, %v1907, %v1906
        %v1909 = vsel %vm1697, %v1663, %v1908
        %v1910 = vrot.slane %v1664, 7
        %v1911 = vsel %vm1700, %v1910, %v1909
        %1912 = vrot.lane.b32.xlu0 %v1897, 64
        %v1913 = vpop.permute.xlu0 %1912
        %1914 = vrot.lane.b32.xlu0 %v1911, 64
        %v1915 = vpop.permute.xlu0 %1914
        %v1918 = vrot.slane %v1649, 7
        %v1919 = vrot.slane %v1650, 6
        %v1920 = vsel %vm1682, %v1919, %v1918
        %v1921 = vrot.slane %v1651, 5
        %v1922 = vsel %vm1685, %v1921, %v1920
        %v1923 = vrot.slane %v1652, 4
        %v1924 = vsel %vm1688, %v1923, %v1922
        %v1925 = vrot.slane %v1653, 3
        %v1926 = vsel %vm1691, %v1925, %v1924
        %v1927 = vrot.slane %v1654, 2
        %v1928 = vsel %vm1694, %v1927, %v1926
        %v1929 = vrot.slane %v1655, 1
        %v1930 = vsel %vm1697, %v1929, %v1928
        %v1931 = vsel %vm1700, %v1656, %v1930
        %v1932 = vrot.slane %v1657, 7
        %v1933 = vrot.slane %v1658, 6
        %v1934 = vsel %vm1682, %v1933, %v1932
        %v1935 = vrot.slane %v1659, 5
        %v1936 = vsel %vm1685, %v1935, %v1934
        %v1937 = vrot.slane %v1660, 4
        %v1938 = vsel %vm1688, %v1937, %v1936
        %v1939 = vrot.slane %v1661, 3
        %v1940 = vsel %vm1691, %v1939, %v1938
        %v1941 = vrot.slane %v1662, 2
        %v1942 = vsel %vm1694, %v1941, %v1940
        %v1943 = vrot.slane %v1663, 1
        %v1944 = vsel %vm1697, %v1943, %v1942
        %v1945 = vsel %vm1700, %v1664, %v1944
        %1946 = vrot.lane.b32.xlu0 %v1931, 96
        %v1947 = vpop.permute.xlu0 %1946
        %1948 = vrot.lane.b32.xlu0 %v1945, 96
        %v1949 = vpop.permute.xlu0 %1948
        %v1952 = vsel %vm933, %v1701, %v1747
        %v1953 = vsel %vm933, %v1715, %v1749
        %v1954 = vsel %vm811, %v1952, %v1781
        %v1955 = vsel %vm811, %v1953, %v1783
        %vm1956 = vcmask 785408
        %v1957 = vsel %vm1956, %v1954, %v1815
        %v1958 = vsel %vm1956, %v1955, %v1817
        %v1959 = vsel %vm933, %v1833, %v1879
        %v1960 = vsel %vm933, %v1847, %v1881
        %v1961 = vsel %vm811, %v1959, %v1913
        %v1962 = vsel %vm811, %v1960, %v1915
        %v1963 = vsel %vm1956, %v1961, %v1947
        %v1964 = vsel %vm1956, %v1962, %v1949
        %v1965 = vpack.c.bf16 %v1958, %v1957
        %v1966 = vpack.c.bf16 %v1964, %v1963
        %v1967 = vld [vmem:[%s9] sm:$0xf]
        %v1968 = vld [vmem:[%s9 + $0x4] sm:$0xf]
        %v1969 = vld [vmem:[%s9 + $0x8] sm:$0xf]
        %v1970 = vld [vmem:[%s9 + $0xc] sm:$0xf]
        %v1971 = vld [vmem:[%s9 + $0x10] sm:$0xf]
        %v1972 = vld [vmem:[%s9 + $0x14] sm:$0xf]
        %v1973 = vld [vmem:[%s9 + $0x18] sm:$0xf]
        %v1974 = vld [vmem:[%s9 + $0x1c] sm:$0xf]
        %v1975 = vld [vmem:[%s9 + $0x20] sm:$0xf]
        %v1976 = vld [vmem:[%s9 + $0x24] sm:$0xf]
        %v1977 = vld [vmem:[%s9 + $0x28] sm:$0xf]
        %v1978 = vld [vmem:[%s9 + $0x2c] sm:$0xf]
        %v1979 = vld [vmem:[%s9 + $0x30] sm:$0xf]
        %v1980 = vld [vmem:[%s9 + $0x34] sm:$0xf]
        %v1981 = vld [vmem:[%s9 + $0x38] sm:$0xf]
        %v1982 = vld [vmem:[%s9 + $0x3c] sm:$0xf]
        %v1983 = vld [vmem:[%s9 + $0x40] sm:$0xf]
        %v1984 = vld [vmem:[%s9 + $0x44] sm:$0xf]
        %v1985 = vld [vmem:[%s9 + $0x48] sm:$0xf]
        %v1986 = vld [vmem:[%s9 + $0x4c] sm:$0xf]
        %v1987 = vld [vmem:[%s9 + $0x50] sm:$0xf]
        %v1988 = vld [vmem:[%s9 + $0x54] sm:$0xf]
        %v1989 = vld [vmem:[%s9 + $0x58] sm:$0xf]
        %v1990 = vld [vmem:[%s9 + $0x5c] sm:$0xf]
        %v1991 = vld [vmem:[%s9 + $0x60] sm:$0xf]
        %v1992 = vld [vmem:[%s9 + $0x64] sm:$0xf]
        %v1993 = vld [vmem:[%s9 + $0x68] sm:$0xf]
        %v1994 = vld [vmem:[%s9 + $0x6c] sm:$0xf]
        %v1995 = vld [vmem:[%s9 + $0x70] sm:$0xf]
        %v1996 = vld [vmem:[%s9 + $0x74] sm:$0xf]
        %v1997 = vld [vmem:[%s9 + $0x78] sm:$0xf]
        %v1998 = vld [vmem:[%s9 + $0x7c] sm:$0xf]
        %v1999 = vld [vmem:[%s10] sm:$0x1]
        %v2001 = vlaneseq
        %v2002 = vshrl.u32 %v2001, 7
        %v2003 = vsub.s32 0, %v2002
        %v2004 = vrot.slane %v1999, %v2003
        %v2038 = vunpack.c.l.b16 %v1967
        %v2039 = vunpack.c.l.b16 %v1968
        %v2040 = vunpack.c.l.b16 %v1969
        %v2041 = vunpack.c.l.b16 %v1970
        %v2042 = vunpack.c.l.b16 %v1971
        %v2043 = vunpack.c.l.b16 %v1972
        %v2044 = vunpack.c.l.b16 %v1973
        %v2045 = vunpack.c.l.b16 %v1974
        %v2046 = vunpack.c.l.b16 %v1975
        %v2047 = vunpack.c.l.b16 %v1976
        %v2048 = vunpack.c.l.b16 %v1977
        %v2049 = vunpack.c.l.b16 %v1978
        %v2050 = vunpack.c.l.b16 %v1979
        %v2051 = vunpack.c.l.b16 %v1980
        %v2052 = vunpack.c.l.b16 %v1981
        %v2053 = vunpack.c.l.b16 %v1982
        %v2054 = vunpack.c.l.b16 %v1983
        %v2055 = vunpack.c.l.b16 %v1984
        %v2056 = vunpack.c.l.b16 %v1985
        %v2057 = vunpack.c.l.b16 %v1986
        %v2058 = vunpack.c.l.b16 %v1987
        %v2059 = vunpack.c.l.b16 %v1988
        %v2060 = vunpack.c.l.b16 %v1989
        %v2061 = vunpack.c.l.b16 %v1990
        %v2062 = vunpack.c.l.b16 %v1991
        %v2063 = vunpack.c.l.b16 %v1992
        %v2064 = vunpack.c.l.b16 %v1993
        %v2065 = vunpack.c.l.b16 %v1994
        %v2066 = vunpack.c.l.b16 %v1995
        %v2067 = vunpack.c.l.b16 %v1996
        %v2068 = vunpack.c.l.b16 %v1997
        %v2069 = vunpack.c.l.b16 %v1998
        %v2070 = vpack.c.b16 %v2039, %v2038
        %v2071 = vpack.c.b16 %v2041, %v2040
        %v2072 = vpack.c.b16 %v2043, %v2042
        %v2073 = vpack.c.b16 %v2045, %v2044
        %v2074 = vpack.c.b16 %v2047, %v2046
        %v2075 = vpack.c.b16 %v2049, %v2048
        %v2076 = vpack.c.b16 %v2051, %v2050
        %v2077 = vpack.c.b16 %v2053, %v2052
        %v2078 = vpack.c.b16 %v2055, %v2054
        %v2079 = vpack.c.b16 %v2057, %v2056
        %v2080 = vpack.c.b16 %v2059, %v2058
        %v2081 = vpack.c.b16 %v2061, %v2060
        %v2082 = vpack.c.b16 %v2063, %v2062
        %v2083 = vpack.c.b16 %v2065, %v2064
        %v2084 = vpack.c.b16 %v2067, %v2066
        %v2085 = vpack.c.b16 %v2069, %v2068
        %2102 = vmatprep.subr.bf16.mxu0 0
        %2103 = vmatpush1.bf16.msra.mxu0 %v2077
        %2104 = vmatprep.subr.bf16.mxu0 0
        %2105 = vmatpush1.bf16.msra.mxu0 %v2076
        %2106 = vmatprep.subr.bf16.mxu0 0
        %2107 = vmatpush1.bf16.msra.mxu0 %v2075
        %2108 = vmatprep.subr.bf16.mxu0 0
        %2109 = vmatpush1.bf16.msra.mxu0 %v2074
        %2110 = vmatprep.subr.bf16.mxu0 0
        %2111 = vmatpush1.bf16.msra.mxu0 %v2073
        %2112 = vmatprep.subr.bf16.mxu0 0
        %2113 = vmatpush1.bf16.msra.mxu0 %v2072
        %2114 = vmatprep.subr.bf16.mxu0 0
        %2115 = vmatpush1.bf16.msra.mxu0 %v2071
        %2116 = vmatprep.subr.bf16.mxu0 0
        %2117 = vmatpush1.bf16.msra.mxu0 %v2070
        %2118 = vmatprep.subr.bf16.mxu0 0
        %2119 = vmatpush2.bf16.msra.mxu0 %v2085
        %2120 = vmatprep.subr.bf16.mxu0 0
        %2121 = vmatpush2.bf16.msra.mxu0 %v2084
        %2122 = vmatprep.subr.bf16.mxu0 0
        %2123 = vmatpush2.bf16.msra.mxu0 %v2083
        %2124 = vmatprep.subr.bf16.mxu0 0
        %2125 = vmatpush2.bf16.msra.mxu0 %v2082
        %2126 = vmatprep.subr.bf16.mxu0 0
        %2127 = vmatpush2.bf16.msra.mxu0 %v2081
        %2128 = vmatprep.subr.bf16.mxu0 0
        %2129 = vmatpush2.bf16.msra.mxu0 %v2080
        %2130 = vmatprep.subr.bf16.mxu0 0
        %2131 = vmatpush2.bf16.msra.mxu0 %v2079
        %2132 = vmatprep.subr.bf16.mxu0 0
        %2133 = vmatpush2.bf16.msra.mxu0 %v2078
        %2134 = vmatprep.mubr.bf16.mxu0 %v1966
        %2135 = vmatmul.mubr.bf16.gmra.mxu0 %v1965
        %v2136 = vpop.f32.mrf.mxu0
        %v2137 = vadd.f32 %v2004, %v2136
        %v2138 = vpop.f32.mrf.mxu0
        %v2139 = vpop.f32.mrf.mxu0
        %v2140 = vadd.f32 %v2004, %v2139
        %v2141 = vpop.f32.mrf.mxu0
        %2142 = vdwg.mxu0
        %2143 = vst.msk [vmem:[%s504] sm:$0xff] %vm933, %v2137
        %2144 = vst.msk [vmem:[%s504 + $0x8] sm:$0xff] %vm933, %v2140
        %2146 = vset.pattern.permute.xlu0 0
        %2147 = vperm.xlu0 %2146, %v744
        %v2148 = vpop.permute.xlu0 %2147
        %2151 = vset.pattern.permute.xlu0 0
        %2152 = vperm.xlu0 %2151, %v745
        %v2153 = vpop.permute.xlu0 %2152
        %v2155 = vadd.f32 %v1465, %v2148
        %v2156 = vadd.f32 %v1466, %v2148
        %v2157 = vadd.f32 %v1467, %v2148
        %v2158 = vadd.f32 %v1468, %v2148
        %v2159 = vadd.f32 %v1469, %v2148
        %v2160 = vadd.f32 %v1470, %v2148
        %v2161 = vadd.f32 %v1471, %v2148
        %v2162 = vadd.f32 %v1472, %v2148
        %v2163 = vadd.f32 %v1473, %v2153
        %v2164 = vadd.f32 %v1474, %v2153
        %v2165 = vadd.f32 %v1475, %v2153
        %v2166 = vadd.f32 %v1476, %v2153
        %v2167 = vadd.f32 %v1477, %v2153
        %v2168 = vadd.f32 %v1478, %v2153
        %v2169 = vadd.f32 %v1479, %v2153
        %v2170 = vadd.f32 %v1480, %v2153
        %v2171 = vsel %vm811, %v2155, -inf
        %v2172 = vrot.slane %v2171, 4
        %v2173 = vmax.f32 %v2171, %v2172
        %v2174 = vrot.slane %v2173, 2
        %v2175 = vmax.f32 %v2173, %v2174
        %v2176 = vrot.slane %v2175, 1
        %v2177 = vmax.f32 %v2175, %v2176
        %v2178 = vsel %vm811, %v2156, -inf
        %v2179 = vrot.slane %v2178, 4
        %v2180 = vmax.f32 %v2178, %v2179
        %v2181 = vrot.slane %v2180, 2
        %v2182 = vmax.f32 %v2180, %v2181
        %v2183 = vrot.slane %v2182, 1
        %v2184 = vmax.f32 %v2182, %v2183
        %v2185 = vsel %vm811, %v2157, -inf
        %v2186 = vrot.slane %v2185, 4
        %v2187 = vmax.f32 %v2185, %v2186
        %v2188 = vrot.slane %v2187, 2
        %v2189 = vmax.f32 %v2187, %v2188
        %v2190 = vrot.slane %v2189, 1
        %v2191 = vmax.f32 %v2189, %v2190
        %v2192 = vsel %vm811, %v2158, -inf
        %v2193 = vrot.slane %v2192, 4
        %v2194 = vmax.f32 %v2192, %v2193
        %v2195 = vrot.slane %v2194, 2
        %v2196 = vmax.f32 %v2194, %v2195
        %v2197 = vrot.slane %v2196, 1
        %v2198 = vmax.f32 %v2196, %v2197
        %v2199 = vsel %vm811, %v2159, -inf
        %v2200 = vrot.slane %v2199, 4
        %v2201 = vmax.f32 %v2199, %v2200
        %v2202 = vrot.slane %v2201, 2
        %v2203 = vmax.f32 %v2201, %v2202
        %v2204 = vrot.slane %v2203, 1
        %v2205 = vmax.f32 %v2203, %v2204
        %v2206 = vsel %vm811, %v2160, -inf
        %v2207 = vrot.slane %v2206, 4
        %v2208 = vmax.f32 %v2206, %v2207
        %v2209 = vrot.slane %v2208, 2
        %v2210 = vmax.f32 %v2208, %v2209
        %v2211 = vrot.slane %v2210, 1
        %v2212 = vmax.f32 %v2210, %v2211
        %v2213 = vsel %vm811, %v2161, -inf
        %v2214 = vrot.slane %v2213, 4
        %v2215 = vmax.f32 %v2213, %v2214
        %v2216 = vrot.slane %v2215, 2
        %v2217 = vmax.f32 %v2215, %v2216
        %v2218 = vrot.slane %v2217, 1
        %v2219 = vmax.f32 %v2217, %v2218
        %v2220 = vsel %vm811, %v2162, -inf
        %v2221 = vrot.slane %v2220, 4
        %v2222 = vmax.f32 %v2220, %v2221
        %v2223 = vrot.slane %v2222, 2
        %v2224 = vmax.f32 %v2222, %v2223
        %v2225 = vrot.slane %v2224, 1
        %v2226 = vmax.f32 %v2224, %v2225
        %v2227 = vsel %vm811, %v2163, -inf
        %v2228 = vrot.slane %v2227, 4
        %v2229 = vmax.f32 %v2227, %v2228
        %v2230 = vrot.slane %v2229, 2
        %v2231 = vmax.f32 %v2229, %v2230
        %v2232 = vrot.slane %v2231, 1
        %v2233 = vmax.f32 %v2231, %v2232
        %v2234 = vsel %vm811, %v2164, -inf
        %v2235 = vrot.slane %v2234, 4
        %v2236 = vmax.f32 %v2234, %v2235
        %v2237 = vrot.slane %v2236, 2
        %v2238 = vmax.f32 %v2236, %v2237
        %v2239 = vrot.slane %v2238, 1
        %v2240 = vmax.f32 %v2238, %v2239
        %v2241 = vsel %vm811, %v2165, -inf
        %v2242 = vrot.slane %v2241, 4
        %v2243 = vmax.f32 %v2241, %v2242
        %v2244 = vrot.slane %v2243, 2
        %v2245 = vmax.f32 %v2243, %v2244
        %v2246 = vrot.slane %v2245, 1
        %v2247 = vmax.f32 %v2245, %v2246
        %v2248 = vsel %vm811, %v2166, -inf
        %v2249 = vrot.slane %v2248, 4
        %v2250 = vmax.f32 %v2248, %v2249
        %v2251 = vrot.slane %v2250, 2
        %v2252 = vmax.f32 %v2250, %v2251
        %v2253 = vrot.slane %v2252, 1
        %v2254 = vmax.f32 %v2252, %v2253
        %v2255 = vsel %vm811, %v2167, -inf
        %v2256 = vrot.slane %v2255, 4
        %v2257 = vmax.f32 %v2255, %v2256
        %v2258 = vrot.slane %v2257, 2
        %v2259 = vmax.f32 %v2257, %v2258
        %v2260 = vrot.slane %v2259, 1
        %v2261 = vmax.f32 %v2259, %v2260
        %v2262 = vsel %vm811, %v2168, -inf
        %v2263 = vrot.slane %v2262, 4
        %v2264 = vmax.f32 %v2262, %v2263
        %v2265 = vrot.slane %v2264, 2
        %v2266 = vmax.f32 %v2264, %v2265
        %v2267 = vrot.slane %v2266, 1
        %v2268 = vmax.f32 %v2266, %v2267
        %v2269 = vsel %vm811, %v2169, -inf
        %v2270 = vrot.slane %v2269, 4
        %v2271 = vmax.f32 %v2269, %v2270
        %v2272 = vrot.slane %v2271, 2
        %v2273 = vmax.f32 %v2271, %v2272
        %v2274 = vrot.slane %v2273, 1
        %v2275 = vmax.f32 %v2273, %v2274
        %v2276 = vsel %vm811, %v2170, -inf
        %v2277 = vrot.slane %v2276, 4
        %v2278 = vmax.f32 %v2276, %v2277
        %v2279 = vrot.slane %v2278, 2
        %v2280 = vmax.f32 %v2278, %v2279
        %v2281 = vrot.slane %v2280, 1
        %v2282 = vmax.f32 %v2280, %v2281
        %v2283 = vsub.f32 %v2155, %v2177
        %v2284 = vsub.f32 %v2156, %v2184
        %v2285 = vsub.f32 %v2157, %v2191
        %v2286 = vsub.f32 %v2158, %v2198
        %v2287 = vsub.f32 %v2159, %v2205
        %v2288 = vsub.f32 %v2160, %v2212
        %v2289 = vsub.f32 %v2161, %v2219
        %v2290 = vsub.f32 %v2162, %v2226
        %v2291 = vsub.f32 %v2163, %v2233
        %v2292 = vsub.f32 %v2164, %v2240
        %v2293 = vsub.f32 %v2165, %v2247
        %v2294 = vsub.f32 %v2166, %v2254
        %v2295 = vsub.f32 %v2167, %v2261
        %v2296 = vsub.f32 %v2168, %v2268
        %v2297 = vsub.f32 %v2169, %v2275
        %v2298 = vsub.f32 %v2170, %v2282
        %v2299 = vmul.f32 %v2283, 1.442695
        %v2300 = vpow.pop %v2299
        %v2301 = vmul.f32 %v2284, 1.442695
        %v2302 = vpow.pop %v2301
        %v2303 = vmul.f32 %v2285, 1.442695
        %v2304 = vpow.pop %v2303
        %v2305 = vmul.f32 %v2286, 1.442695
        %v2306 = vpow.pop %v2305
        %v2307 = vmul.f32 %v2287, 1.442695
        %v2308 = vpow.pop %v2307
        %v2309 = vmul.f32 %v2288, 1.442695
        %v2310 = vpow.pop %v2309
        %v2311 = vmul.f32 %v2289, 1.442695
        %v2312 = vpow.pop %v2311
        %v2313 = vmul.f32 %v2290, 1.442695
        %v2314 = vpow.pop %v2313
        %v2315 = vmul.f32 %v2291, 1.442695
        %v2316 = vpow.pop %v2315
        %v2317 = vmul.f32 %v2292, 1.442695
        %v2318 = vpow.pop %v2317
        %v2319 = vmul.f32 %v2293, 1.442695
        %v2320 = vpow.pop %v2319
        %v2321 = vmul.f32 %v2294, 1.442695
        %v2322 = vpow.pop %v2321
        %v2323 = vmul.f32 %v2295, 1.442695
        %v2324 = vpow.pop %v2323
        %v2325 = vmul.f32 %v2296, 1.442695
        %v2326 = vpow.pop %v2325
        %v2327 = vmul.f32 %v2297, 1.442695
        %v2328 = vpow.pop %v2327
        %v2329 = vmul.f32 %v2298, 1.442695
        %v2330 = vpow.pop %v2329
        %v2331 = vsel %vm811, %v2300, 0.0
        %v2332 = vrot.slane %v2331, 4
        %v2333 = vadd.f32 %v2331, %v2332
        %v2334 = vrot.slane %v2333, 2
        %v2335 = vadd.f32 %v2333, %v2334
        %v2336 = vrot.slane %v2335, 1
        %v2337 = vadd.f32 %v2335, %v2336
        %v2338 = vsel %vm811, %v2302, 0.0
        %v2339 = vrot.slane %v2338, 4
        %v2340 = vadd.f32 %v2338, %v2339
        %v2341 = vrot.slane %v2340, 2
        %v2342 = vadd.f32 %v2340, %v2341
        %v2343 = vrot.slane %v2342, 1
        %v2344 = vadd.f32 %v2342, %v2343
        %v2345 = vsel %vm811, %v2304, 0.0
        %v2346 = vrot.slane %v2345, 4
        %v2347 = vadd.f32 %v2345, %v2346
        %v2348 = vrot.slane %v2347, 2
        %v2349 = vadd.f32 %v2347, %v2348
        %v2350 = vrot.slane %v2349, 1
        %v2351 = vadd.f32 %v2349, %v2350
        %v2352 = vsel %vm811, %v2306, 0.0
        %v2353 = vrot.slane %v2352, 4
        %v2354 = vadd.f32 %v2352, %v2353
        %v2355 = vrot.slane %v2354, 2
        %v2356 = vadd.f32 %v2354, %v2355
        %v2357 = vrot.slane %v2356, 1
        %v2358 = vadd.f32 %v2356, %v2357
        %v2359 = vsel %vm811, %v2308, 0.0
        %v2360 = vrot.slane %v2359, 4
        %v2361 = vadd.f32 %v2359, %v2360
        %v2362 = vrot.slane %v2361, 2
        %v2363 = vadd.f32 %v2361, %v2362
        %v2364 = vrot.slane %v2363, 1
        %v2365 = vadd.f32 %v2363, %v2364
        %v2366 = vsel %vm811, %v2310, 0.0
        %v2367 = vrot.slane %v2366, 4
        %v2368 = vadd.f32 %v2366, %v2367
        %v2369 = vrot.slane %v2368, 2
        %v2370 = vadd.f32 %v2368, %v2369
        %v2371 = vrot.slane %v2370, 1
        %v2372 = vadd.f32 %v2370, %v2371
        %v2373 = vsel %vm811, %v2312, 0.0
        %v2374 = vrot.slane %v2373, 4
        %v2375 = vadd.f32 %v2373, %v2374
        %v2376 = vrot.slane %v2375, 2
        %v2377 = vadd.f32 %v2375, %v2376
        %v2378 = vrot.slane %v2377, 1
        %v2379 = vadd.f32 %v2377, %v2378
        %v2380 = vsel %vm811, %v2314, 0.0
        %v2381 = vrot.slane %v2380, 4
        %v2382 = vadd.f32 %v2380, %v2381
        %v2383 = vrot.slane %v2382, 2
        %v2384 = vadd.f32 %v2382, %v2383
        %v2385 = vrot.slane %v2384, 1
        %v2386 = vadd.f32 %v2384, %v2385
        %v2387 = vsel %vm811, %v2316, 0.0
        %v2388 = vrot.slane %v2387, 4
        %v2389 = vadd.f32 %v2387, %v2388
        %v2390 = vrot.slane %v2389, 2
        %v2391 = vadd.f32 %v2389, %v2390
        %v2392 = vrot.slane %v2391, 1
        %v2393 = vadd.f32 %v2391, %v2392
        %v2394 = vsel %vm811, %v2318, 0.0
        %v2395 = vrot.slane %v2394, 4
        %v2396 = vadd.f32 %v2394, %v2395
        %v2397 = vrot.slane %v2396, 2
        %v2398 = vadd.f32 %v2396, %v2397
        %v2399 = vrot.slane %v2398, 1
        %v2400 = vadd.f32 %v2398, %v2399
        %v2401 = vsel %vm811, %v2320, 0.0
        %v2402 = vrot.slane %v2401, 4
        %v2403 = vadd.f32 %v2401, %v2402
        %v2404 = vrot.slane %v2403, 2
        %v2405 = vadd.f32 %v2403, %v2404
        %v2406 = vrot.slane %v2405, 1
        %v2407 = vadd.f32 %v2405, %v2406
        %v2408 = vsel %vm811, %v2322, 0.0
        %v2409 = vrot.slane %v2408, 4
        %v2410 = vadd.f32 %v2408, %v2409
        %v2411 = vrot.slane %v2410, 2
        %v2412 = vadd.f32 %v2410, %v2411
        %v2413 = vrot.slane %v2412, 1
        %v2414 = vadd.f32 %v2412, %v2413
        %v2415 = vsel %vm811, %v2324, 0.0
        %v2416 = vrot.slane %v2415, 4
        %v2417 = vadd.f32 %v2415, %v2416
        %v2418 = vrot.slane %v2417, 2
        %v2419 = vadd.f32 %v2417, %v2418
        %v2420 = vrot.slane %v2419, 1
        %v2421 = vadd.f32 %v2419, %v2420
        %v2422 = vsel %vm811, %v2326, 0.0
        %v2423 = vrot.slane %v2422, 4
        %v2424 = vadd.f32 %v2422, %v2423
        %v2425 = vrot.slane %v2424, 2
        %v2426 = vadd.f32 %v2424, %v2425
        %v2427 = vrot.slane %v2426, 1
        %v2428 = vadd.f32 %v2426, %v2427
        %v2429 = vsel %vm811, %v2328, 0.0
        %v2430 = vrot.slane %v2429, 4
        %v2431 = vadd.f32 %v2429, %v2430
        %v2432 = vrot.slane %v2431, 2
        %v2433 = vadd.f32 %v2431, %v2432
        %v2434 = vrot.slane %v2433, 1
        %v2435 = vadd.f32 %v2433, %v2434
        %v2436 = vsel %vm811, %v2330, 0.0
        %v2437 = vrot.slane %v2436, 4
        %v2438 = vadd.f32 %v2436, %v2437
        %v2439 = vrot.slane %v2438, 2
        %v2440 = vadd.f32 %v2438, %v2439
        %v2441 = vrot.slane %v2440, 1
        %v2442 = vadd.f32 %v2440, %v2441
        %v2443 = vmul.f32 %v2300, %v867
        %v2444 = vmul.f32 %v2302, %v867
        %v2445 = vmul.f32 %v2304, %v867
        %v2446 = vmul.f32 %v2306, %v867
        %v2447 = vmul.f32 %v2308, %v867
        %v2448 = vmul.f32 %v2310, %v867
        %v2449 = vmul.f32 %v2312, %v867
        %v2450 = vmul.f32 %v2314, %v867
        %v2451 = vmul.f32 %v2316, %v869
        %v2452 = vmul.f32 %v2318, %v869
        %v2453 = vmul.f32 %v2320, %v869
        %v2454 = vmul.f32 %v2322, %v869
        %v2455 = vmul.f32 %v2324, %v869
        %v2456 = vmul.f32 %v2326, %v869
        %v2457 = vmul.f32 %v2328, %v869
        %v2458 = vmul.f32 %v2330, %v869
        %v2459 = vsel %vm811, %v2443, 0.0
        %v2460 = vrot.slane %v2459, 4
        %v2461 = vadd.f32 %v2459, %v2460
        %v2462 = vrot.slane %v2461, 2
        %v2463 = vadd.f32 %v2461, %v2462
        %v2464 = vrot.slane %v2463, 1
        %v2465 = vadd.f32 %v2463, %v2464
        %v2466 = vsel %vm811, %v2444, 0.0
        %v2467 = vrot.slane %v2466, 4
        %v2468 = vadd.f32 %v2466, %v2467
        %v2469 = vrot.slane %v2468, 2
        %v2470 = vadd.f32 %v2468, %v2469
        %v2471 = vrot.slane %v2470, 1
        %v2472 = vadd.f32 %v2470, %v2471
        %v2473 = vsel %vm811, %v2445, 0.0
        %v2474 = vrot.slane %v2473, 4
        %v2475 = vadd.f32 %v2473, %v2474
        %v2476 = vrot.slane %v2475, 2
        %v2477 = vadd.f32 %v2475, %v2476
        %v2478 = vrot.slane %v2477, 1
        %v2479 = vadd.f32 %v2477, %v2478
        %v2480 = vsel %vm811, %v2446, 0.0
        %v2481 = vrot.slane %v2480, 4
        %v2482 = vadd.f32 %v2480, %v2481
        %v2483 = vrot.slane %v2482, 2
        %v2484 = vadd.f32 %v2482, %v2483
        %v2485 = vrot.slane %v2484, 1
        %v2486 = vadd.f32 %v2484, %v2485
        %v2487 = vsel %vm811, %v2447, 0.0
        %v2488 = vrot.slane %v2487, 4
        %v2489 = vadd.f32 %v2487, %v2488
        %v2490 = vrot.slane %v2489, 2
        %v2491 = vadd.f32 %v2489, %v2490
        %v2492 = vrot.slane %v2491, 1
        %v2493 = vadd.f32 %v2491, %v2492
        %v2494 = vsel %vm811, %v2448, 0.0
        %v2495 = vrot.slane %v2494, 4
        %v2496 = vadd.f32 %v2494, %v2495
        %v2497 = vrot.slane %v2496, 2
        %v2498 = vadd.f32 %v2496, %v2497
        %v2499 = vrot.slane %v2498, 1
        %v2500 = vadd.f32 %v2498, %v2499
        %v2501 = vsel %vm811, %v2449, 0.0
        %v2502 = vrot.slane %v2501, 4
        %v2503 = vadd.f32 %v2501, %v2502
        %v2504 = vrot.slane %v2503, 2
        %v2505 = vadd.f32 %v2503, %v2504
        %v2506 = vrot.slane %v2505, 1
        %v2507 = vadd.f32 %v2505, %v2506
        %v2508 = vsel %vm811, %v2450, 0.0
        %v2509 = vrot.slane %v2508, 4
        %v2510 = vadd.f32 %v2508, %v2509
        %v2511 = vrot.slane %v2510, 2
        %v2512 = vadd.f32 %v2510, %v2511
        %v2513 = vrot.slane %v2512, 1
        %v2514 = vadd.f32 %v2512, %v2513
        %v2515 = vsel %vm811, %v2451, 0.0
        %v2516 = vrot.slane %v2515, 4
        %v2517 = vadd.f32 %v2515, %v2516
        %v2518 = vrot.slane %v2517, 2
        %v2519 = vadd.f32 %v2517, %v2518
        %v2520 = vrot.slane %v2519, 1
        %v2521 = vadd.f32 %v2519, %v2520
        %v2522 = vsel %vm811, %v2452, 0.0
        %v2523 = vrot.slane %v2522, 4
        %v2524 = vadd.f32 %v2522, %v2523
        %v2525 = vrot.slane %v2524, 2
        %v2526 = vadd.f32 %v2524, %v2525
        %v2527 = vrot.slane %v2526, 1
        %v2528 = vadd.f32 %v2526, %v2527
        %v2529 = vsel %vm811, %v2453, 0.0
        %v2530 = vrot.slane %v2529, 4
        %v2531 = vadd.f32 %v2529, %v2530
        %v2532 = vrot.slane %v2531, 2
        %v2533 = vadd.f32 %v2531, %v2532
        %v2534 = vrot.slane %v2533, 1
        %v2535 = vadd.f32 %v2533, %v2534
        %v2536 = vsel %vm811, %v2454, 0.0
        %v2537 = vrot.slane %v2536, 4
        %v2538 = vadd.f32 %v2536, %v2537
        %v2539 = vrot.slane %v2538, 2
        %v2540 = vadd.f32 %v2538, %v2539
        %v2541 = vrot.slane %v2540, 1
        %v2542 = vadd.f32 %v2540, %v2541
        %v2543 = vsel %vm811, %v2455, 0.0
        %v2544 = vrot.slane %v2543, 4
        %v2545 = vadd.f32 %v2543, %v2544
        %v2546 = vrot.slane %v2545, 2
        %v2547 = vadd.f32 %v2545, %v2546
        %v2548 = vrot.slane %v2547, 1
        %v2549 = vadd.f32 %v2547, %v2548
        %v2550 = vsel %vm811, %v2456, 0.0
        %v2551 = vrot.slane %v2550, 4
        %v2552 = vadd.f32 %v2550, %v2551
        %v2553 = vrot.slane %v2552, 2
        %v2554 = vadd.f32 %v2552, %v2553
        %v2555 = vrot.slane %v2554, 1
        %v2556 = vadd.f32 %v2554, %v2555
        %v2557 = vsel %vm811, %v2457, 0.0
        %v2558 = vrot.slane %v2557, 4
        %v2559 = vadd.f32 %v2557, %v2558
        %v2560 = vrot.slane %v2559, 2
        %v2561 = vadd.f32 %v2559, %v2560
        %v2562 = vrot.slane %v2561, 1
        %v2563 = vadd.f32 %v2561, %v2562
        %v2564 = vsel %vm811, %v2458, 0.0
        %v2565 = vrot.slane %v2564, 4
        %v2566 = vadd.f32 %v2564, %v2565
        %v2567 = vrot.slane %v2566, 2
        %v2568 = vadd.f32 %v2566, %v2567
        %v2569 = vrot.slane %v2568, 1
        %v2570 = vadd.f32 %v2568, %v2569
        %v2571 = vrcp.pop %v2337
        %v2572 = vrcp.pop %v2344
        %v2573 = vrcp.pop %v2351
        %v2574 = vrcp.pop %v2358
        %v2575 = vrcp.pop %v2365
        %v2576 = vrcp.pop %v2372
        %v2577 = vrcp.pop %v2379
        %v2578 = vrcp.pop %v2386
        %v2579 = vrcp.pop %v2393
        %v2580 = vrcp.pop %v2400
        %v2581 = vrcp.pop %v2407
        %v2582 = vrcp.pop %v2414
        %v2583 = vrcp.pop %v2421
        %v2584 = vrcp.pop %v2428
        %v2585 = vrcp.pop %v2435
        %v2586 = vrcp.pop %v2442
        %v2587 = vmul.f32 %v2465, %v2571
        %v2588 = vmul.f32 %v2472, %v2572
        %v2589 = vmul.f32 %v2479, %v2573
        %v2590 = vmul.f32 %v2486, %v2574
        %v2591 = vmul.f32 %v2493, %v2575
        %v2592 = vmul.f32 %v2500, %v2576
        %v2593 = vmul.f32 %v2507, %v2577
        %v2594 = vmul.f32 %v2514, %v2578
        %v2595 = vmul.f32 %v2521, %v2579
        %v2596 = vmul.f32 %v2528, %v2580
        %v2597 = vmul.f32 %v2535, %v2581
        %v2598 = vmul.f32 %v2542, %v2582
        %v2599 = vmul.f32 %v2549, %v2583
        %v2600 = vmul.f32 %v2556, %v2584
        %v2601 = vmul.f32 %v2563, %v2585
        %v2602 = vmul.f32 %v2570, %v2586
        %v2603 = vpack.c.bf16 %v2587, %v2587
        %v2604 = vpack.c.bf16 %v2588, %v2588
        %v2605 = vpack.c.bf16 %v2589, %v2589
        %v2606 = vpack.c.bf16 %v2590, %v2590
        %v2607 = vpack.c.bf16 %v2591, %v2591
        %v2608 = vpack.c.bf16 %v2592, %v2592
        %v2609 = vpack.c.bf16 %v2593, %v2593
        %v2610 = vpack.c.bf16 %v2594, %v2594
        %v2611 = vpack.c.bf16 %v2595, %v2595
        %v2612 = vpack.c.bf16 %v2596, %v2596
        %v2613 = vpack.c.bf16 %v2597, %v2597
        %v2614 = vpack.c.bf16 %v2598, %v2598
        %v2615 = vpack.c.bf16 %v2599, %v2599
        %v2616 = vpack.c.bf16 %v2600, %v2600
        %v2617 = vpack.c.bf16 %v2601, %v2601
        %v2618 = vpack.c.bf16 %v2602, %v2602
        %v2619 = vld [vmem:[%s11] sm:$0xf]
        %v2620 = vld [vmem:[%s11 + $0x4] sm:$0xf]
        %v2621 = vld [vmem:[%s11 + $0x8] sm:$0xf]
        %v2622 = vld [vmem:[%s11 + $0xc] sm:$0xf]
        %v2623 = vld [vmem:[%s11 + $0x10] sm:$0xf]
        %v2624 = vld [vmem:[%s11 + $0x14] sm:$0xf]
        %v2625 = vld [vmem:[%s11 + $0x18] sm:$0xf]
        %v2626 = vld [vmem:[%s11 + $0x1c] sm:$0xf]
        %v2627 = vld [vmem:[%s12] sm:$0x1]
        %v2629 = vlaneseq
        %v2630 = vshrl.u32 %v2629, 7
        %v2631 = vsub.s32 0, %v2630
        %v2632 = vrot.slane %v2627, %v2631
        %v2650 = vunpack.c.l.b16 %v2603
        %v2651 = vunpack.c.l.b16 %v2604
        %v2652 = vunpack.c.l.b16 %v2605
        %v2653 = vunpack.c.l.b16 %v2606
        %v2654 = vunpack.c.l.b16 %v2607
        %v2655 = vunpack.c.l.b16 %v2608
        %v2656 = vunpack.c.l.b16 %v2609
        %v2657 = vunpack.c.l.b16 %v2610
        %v2658 = vunpack.c.l.b16 %v2611
        %v2659 = vunpack.c.l.b16 %v2612
        %v2660 = vunpack.c.l.b16 %v2613
        %v2661 = vunpack.c.l.b16 %v2614
        %v2662 = vunpack.c.l.b16 %v2615
        %v2663 = vunpack.c.l.b16 %v2616
        %v2664 = vunpack.c.l.b16 %v2617
        %v2665 = vunpack.c.l.b16 %v2618
        %v2666 = vsel %vm1682, %v2651, %v2650
        %v2667 = vsel %vm1685, %v2652, %v2666
        %v2668 = vsel %vm1688, %v2653, %v2667
        %v2669 = vsel %vm1691, %v2654, %v2668
        %v2670 = vsel %vm1694, %v2655, %v2669
        %v2671 = vsel %vm1697, %v2656, %v2670
        %v2672 = vsel %vm1700, %v2657, %v2671
        %v2673 = vsel %vm1682, %v2659, %v2658
        %v2674 = vsel %vm1685, %v2660, %v2673
        %v2675 = vsel %vm1688, %v2661, %v2674
        %v2676 = vsel %vm1691, %v2662, %v2675
        %v2677 = vsel %vm1694, %v2663, %v2676
        %v2678 = vsel %vm1697, %v2664, %v2677
        %v2679 = vsel %vm1700, %v2665, %v2678
        %v2680 = vpack.c.b16 %v2679, %v2672
        %v2689 = vunpack.c.l.b16 %v2619
        %v2690 = vunpack.c.l.b16 %v2620
        %v2691 = vunpack.c.l.b16 %v2621
        %v2692 = vunpack.c.l.b16 %v2622
        %v2693 = vunpack.c.l.b16 %v2623
        %v2694 = vunpack.c.l.b16 %v2624
        %v2695 = vunpack.c.l.b16 %v2625
        %v2696 = vunpack.c.l.b16 %v2626
        %v2697 = vpack.c.b16 %v2690, %v2689
        %v2698 = vpack.c.b16 %v2692, %v2691
        %v2699 = vpack.c.b16 %v2694, %v2693
        %v2700 = vpack.c.b16 %v2696, %v2695
        %v2706 = vsel %vm811, %v2680, 0
        %2708 = vmatprep.subr.bf16.mxu0 0
        %2709 = vmatpush1.bf16.msra.mxu0 0
        %2710 = vmatprep.subr.bf16.mxu0 0
        %2711 = vmatpush1.bf16.msra.mxu0 0
        %2712 = vmatprep.subr.bf16.mxu0 0
        %2713 = vmatpush1.bf16.msra.mxu0 0
        %2714 = vmatprep.subr.bf16.mxu0 0
        %2715 = vmatpush1.bf16.msra.mxu0 0
        %2716 = vmatprep.subr.bf16.mxu0 0
        %2717 = vmatpush1.bf16.msra.mxu0 %v2700
        %2718 = vmatprep.subr.bf16.mxu0 0
        %2719 = vmatpush1.bf16.msra.mxu0 %v2699
        %2720 = vmatprep.subr.bf16.mxu0 0
        %2721 = vmatpush1.bf16.msra.mxu0 %v2698
        %2722 = vmatprep.subr.bf16.mxu0 0
        %2723 = vmatpush1.bf16.msra.mxu0 %v2697
        %2724 = vmatprep.subr.bf16.mxu0 0
        %2725 = vmatpush2.bf16.msra.mxu0 0
        %2726 = vmatprep.subr.bf16.mxu0 0
        %2727 = vmatpush2.bf16.msra.mxu0 0
        %2728 = vmatprep.subr.bf16.mxu0 0
        %2729 = vmatpush2.bf16.msra.mxu0 0
        %2730 = vmatprep.subr.bf16.mxu0 0
        %2731 = vmatpush2.bf16.msra.mxu0 0
        %2732 = vmatprep.subr.bf16.mxu0 0
        %2733 = vmatpush2.bf16.msra.mxu0 0
        %2734 = vmatprep.subr.bf16.mxu0 0
        %2735 = vmatpush2.bf16.msra.mxu0 0
        %2736 = vmatprep.subr.bf16.mxu0 0
        %2737 = vmatpush2.bf16.msra.mxu0 0
        %2738 = vmatprep.subr.bf16.mxu0 0
        %2739 = vmatpush2.bf16.msra.mxu0 0
        %2740 = vmatprep.mubr.bf16.mxu0 0
        %2741 = vmatmul.mubr.bf16.gmra.mxu0 %v2706
        %v2742 = vpop.f32.mrf.mxu0
        %v2743 = vadd.f32 %v2632, %v2742
        %v2744 = vpop.f32.mrf.mxu0
        %v2745 = vpop.f32.mrf.mxu0
        %v2746 = vadd.f32 %v2632, %v2745
        %v2747 = vpop.f32.mrf.mxu0
        %2748 = vdwg.mxu0
        %v2749 = vmul.f32 %v2743, %v860
        %v2750 = vmul.f32 %v2746, %v864
        %2751 = vst.msk [vmem:[%s497] sm:$0xff] %vm811, %v2749
        %2752 = vst.msk [vmem:[%s497 + $0x8] sm:$0xff] %vm811, %v2750
        %s2753 = sand.u32 %s328, 1
        %s2754 = scalar_lea.sflag [#allocation3], %s2753
        %s2755 = sand.u32 %s328, 1
        %s2756 = smul.addr %s2755, 16
        %s2757 = scalar_lea.vmem [#allocation2], %s2756
        %s2758 = sand.u32 %s354, 1
        %s2759 = scalar_lea.sflag [#allocation5], %s2758
        %s2760 = sand.u32 %s354, 1
        %s2761 = smul.addr %s2760, 16
        %s2762 = scalar_lea.vmem [#allocation4], %s2761
        // Predicated region
        $region73: #{node_edge_block_forward.1} parent=71 // pred_check
          %p2763 = pneg %p338
        $region74: #{node_edge_block_forward.1} parent=71 // pred_check_branch
          %2765 = sbr.rel (%p2763) target = $region76
        $region75: #{node_edge_block_forward.1} parent=71 // pred_region
          %s2766 = smul.u32 2, %s32
          %s2768 = ssub.s32 256, 256
          %2769 = vsyncadd %s2754, %s2768
          %s2770 = smul.addr %s2766, 128
          %s2771 = scalar_lea.hbm %s13, %s2770
          %s2772 = sshll.u32 %s2757, 4
          %s2773 = int_to_ptr.vmem [resolvable:$true] %s2772
          %2778 = dma.vmem_to_hbm [thread:$0]  %s2773, 256, %s2771, %s2754, 128, 128, 8
        $region76: #{node_edge_block_forward.1} parent=71 // pred_fallthru
          _
        // Predicated region
        $region77: #{node_edge_block_forward.1} parent=71 // pred_check
          %p2779 = pneg %p364
        $region78: #{node_edge_block_forward.1} parent=71 // pred_check_branch
          %2781 = sbr.rel (%p2779) target = $region80
        $region79: #{node_edge_block_forward.1} parent=71 // pred_region
          %s2782 = smul.u32 2, %s32
          %s2784 = ssub.s32 256, 256
          %2785 = vsyncadd %s2759, %s2784
          %s2786 = smul.addr %s2782, 128
          %s2787 = scalar_lea.hbm %s14, %s2786
          %s2788 = sshll.u32 %s2762, 4
          %s2789 = int_to_ptr.vmem [resolvable:$true] %s2788
          %2794 = dma.vmem_to_hbm [thread:$0]  %s2789, 256, %s2787, %s2759, 128, 128, 8
        $region80: #{node_edge_block_forward.1} parent=71 // pred_fallthru
          _
      $region72: #{node_edge_block_forward.1} parent=5 // pred_fallthru
        _
      %p2795 = scmp.le.s32.totalorder 2, %s27
      // Predicated region
      $region81: #{node_edge_block_forward.1} parent=5 // pred_check
        %p2796 = pneg %p2795
      $region82: #{node_edge_block_forward.1} parent=5 // pred_check_branch
        %2798 = sbr.rel (%p2796) target = $region84
      $region83: #{node_edge_block_forward.1} parent=5 // pred_region
        %s2799 = ssub.s32 %s27, 2
        // Predicated region
        $region85: #{node_edge_block_forward.1} parent=83 // pred_check
          %p2800 = pneg %p344
        $region86: #{node_edge_block_forward.1} parent=83 // pred_check_branch
          %2802 = sbr.rel (%p2800) target = $region88
        $region87: #{node_edge_block_forward.1} parent=83 // pred_region
          %s2803 = sand.u32 %s329, 1
          %s2804 = scalar_lea.sflag [#allocation3], %s2803
          %s2805 = sand.u32 %s329, 1
          %s2806 = smul.addr %s2805, 16
          %s2807 = scalar_lea.vmem [#allocation2], %s2806
          %2808 = dma.done %s2804, 256
        $region88: #{node_edge_block_forward.1} parent=83 // pred_fallthru
          _
        // Predicated region
        $region89: #{node_edge_block_forward.1} parent=83 // pred_check
          %p2809 = pneg %p370
        $region90: #{node_edge_block_forward.1} parent=83 // pred_check_branch
          %2811 = sbr.rel (%p2809) target = $region92
        $region91: #{node_edge_block_forward.1} parent=83 // pred_region
          %s2812 = sand.u32 %s355, 1
          %s2813 = scalar_lea.sflag [#allocation5], %s2812
          %s2814 = sand.u32 %s355, 1
          %s2815 = smul.addr %s2814, 16
          %s2816 = scalar_lea.vmem [#allocation4], %s2815
          %2817 = dma.done %s2813, 256
        $region92: #{node_edge_block_forward.1} parent=83 // pred_fallthru
          _
      $region84: #{node_edge_block_forward.1} parent=5 // pred_fallthru
        _
    $region6: #{node_edge_block_forward.1} parent=1 // loop_footer
      %s31 = sadd.s32 1, %s27
    $region7: #{node_edge_block_forward.1} parent=1 // loop_footer_branch
      %26 = sbr.rel target = $region3
    $region8: #{node_edge_block_forward.1} parent=1 // loop_exit
      _
    %2818 = vsyncpa [#allocation3], 1
    %s2819 = scalar_lea.sflag [#allocation3], 1
    %2820 = vsyncpa %s2819, 1
    %2821 = vsyncpa [#allocation5], 1
    %s2822 = scalar_lea.sflag [#allocation5], 1
    %2823 = vsyncpa %s2822, 1

</llo_original>
